<compile_context>
chip_gen: v7x
topology: tpu7x:2x2x1
jax: 0.10.0
libtpu: 0.0.40
codegen_flags: <defaults>
</compile_context>

<pallas_src>
import functools

import jax
import jax.numpy as jnp
from jax import lax
from jax.experimental import pallas as pl
from jax.experimental.pallas import tpu as pltpu

BN_EPS = 1e-5
GN_EPS = 1e-5


# --------------------------------------------------------------------------- #
# Fused SHSA kernel (one grid step = `bs` batch samples)
# --------------------------------------------------------------------------- #
def _shsa_fused_kernel(x_ref, gng_ref, gnb_ref, wqkv_ref, bqkv_ref,
                       wp1_ref, wp2_ref, bp_ref, o_ref, *, qk_dim, pdim, bs):
    # Parameters loaded once per grid step (tiny, VMEM-resident).
    gng = gng_ref[...]                       # (pdim, 1)  f32
    gnb = gnb_ref[...]                       # (pdim, 1)  f32
    wqkv = wqkv_ref[...]                     # (2qk+pdim, pdim)  bf16, scale folded in
    bqkv = bqkv_ref[...]                     # (2qk+pdim, 1)     f32,  scale folded in
    wp1 = wp1_ref[...]                       # (dim, pdim)       bf16
    wp2 = wp2_ref[...]                       # (dim, dim-pdim)   bf16
    bp = bp_ref[...]                         # (dim, 1)          f32

    for i in range(bs):                      # static unroll over samples in this step
        x = x_ref[i]                         # (dim, N), channel-major, f32
        x1 = x[:pdim, :]                     # attention branch
        x2 = x[pdim:, :]                     # pass-through branch

        # ---- GroupNorm(num_groups=1): one-pass stats over all (pdim, N) elems ----
        m1 = jnp.mean(x1)
        m2 = jnp.mean(x1 * x1)
        var = m2 - m1 * m1
        x1n = (x1 - m1) * lax.rsqrt(var + GN_EPS)
        x1n = x1n * gng + gnb                # per-channel affine (f32)

        # ---- qkv = fused Conv1x1+BN (bf16 operands, f32 accumulation) ----
        qkv = jnp.dot(wqkv, x1n.astype(jnp.bfloat16),
                      preferred_element_type=jnp.float32) + bqkv
        q = qkv[:qk_dim, :].astype(jnp.bfloat16)             # (qk, N), scale pre-folded
        k = qkv[qk_dim:2 * qk_dim, :].astype(jnp.bfloat16)   # (qk, N)
        v = qkv[2 * qk_dim:, :].astype(jnp.bfloat16)         # (pdim, N)

        # ---- transposed scores: sT[j, i] = k_j . q_i (keys on sublanes) ----
        sT = lax.dot_general(k, q, (((0,), (0,)), ((), ())),
                             preferred_element_type=jnp.float32)        # (Nk, Nq) f32
        sT = sT - jnp.max(sT, axis=0, keepdims=True)
        pT = jnp.exp(sT)                                                # unnormalized
        denom = jnp.sum(pT, axis=0, keepdims=True)                      # (1, Nq)

        # ---- x1o = v @ pT with deferred softmax normalization ----
        x1o = jnp.dot(v, pT.astype(jnp.bfloat16),
                      preferred_element_type=jnp.float32)               # (pdim, Nq)
        x1o = x1o * pl.reciprocal(denom, approx=True)

        # ---- proj = ReLU -> fused Conv1x1+BN on concat([x1o, x2]) (split-K) ----
        a = jnp.maximum(x1o, 0.0).astype(jnp.bfloat16)
        b = jnp.maximum(x2, 0.0).astype(jnp.bfloat16)
        y = jnp.dot(wp1, a, preferred_element_type=jnp.float32)
        y = y + jnp.dot(wp2, b, preferred_element_type=jnp.float32)
        o_ref[i] = y + bp


def _samples_per_step(batch):
    """v7x (2 TensorCores/chip): one sample per grid step so B shards across cores.
    Single-TC chips (v5e/v6e): whole batch in one step (overhead-bound kernel)."""
    try:
        kind = jax.devices()[0].device_kind.lower()
    except Exception:
        kind = ""
    if "v7" in kind or "7x" in kind:
        # TODO(synk): for B == 1 on v7x, add a second parallel axis (split N or
        # output channels) so the second TensorCore is not idle.
        return 1
    return batch


def shsa_forward(x_nchw, params, *, dim, qk_dim, pdim, samples_per_step=None):
    """SHSA forward.  x_nchw: (B, dim, H, W) float32 -> (B, dim, H, W) float32."""
    B, C, H, W = x_nchw.shape
    assert C == dim
    N = H * W
    # Lane/sublane alignment guards (see TODO above for non-aligned configs).
    assert N % 128 == 0, f"N = H*W = {N} must be a multiple of 128"
    assert dim % 8 == 0 and pdim % 8 == 0 and qk_dim % 8 == 0

    bs = samples_per_step if samples_per_step is not None else _samples_per_step(B)
    bs = max(1, min(int(bs), B))
    assert B % bs == 0, (B, bs)

    x = x_nchw.reshape(B, dim, N).astype(jnp.float32)   # contiguous reshape only

    no = 2 * qk_dim + pdim
    gng = params["gn_gamma"].reshape(pdim, 1).astype(jnp.float32)
    gnb = params["gn_beta"].reshape(pdim, 1).astype(jnp.float32)
    wqkv, bqkv = params["qkv"]
    wproj, bproj = params["proj"]

    # Fold the attention scale into the q rows of the qkv conv (free: it rides the
    # qkv matmul), then pre-cast matmul weights to bf16 (MXU-native). Biases stay f32.
    scale = qk_dim ** (-0.5)
    row_scale = jnp.concatenate(
        [jnp.full((qk_dim, 1), scale, jnp.float32),
         jnp.ones((no - qk_dim, 1), jnp.float32)], axis=0)
    wqkv_s = (wqkv.astype(jnp.float32) * row_scale).astype(jnp.bfloat16)
    bqkv_s = (bqkv.reshape(no, 1).astype(jnp.float32) * row_scale)
    wp1 = wproj[:, :pdim].astype(jnp.bfloat16)    # static split -> no in-kernel concat
    wp2 = wproj[:, pdim:].astype(jnp.bfloat16)
    bp = bproj.reshape(dim, 1).astype(jnp.float32)

    # Advisory cost estimate (helps XLA schedule around this small custom call).
    flops = B * (2 * no * pdim * N + 2 * qk_dim * N * N
                 + 2 * pdim * N * N + 2 * dim * dim * N)
    transcendentals = B * N * N
    bytes_accessed = (2 * B * dim * N * 4                                 # x in + y out
                      + (wqkv_s.size + wp1.size + wp2.size) * 2           # bf16 weights
                      + (bqkv_s.size + bp.size + gng.size + gnb.size) * 4)

    kern = functools.partial(_shsa_fused_kernel, qk_dim=qk_dim, pdim=pdim, bs=bs)
    out = pl.pallas_call(
        kern,
        out_shape=jax.ShapeDtypeStruct((B, dim, N), jnp.float32),
        grid=(B // bs,),
        in_specs=[
            pl.BlockSpec((bs, dim, N), lambda g: (g, 0, 0)),      # x (bs samples)
            pl.BlockSpec((pdim, 1), lambda g: (0, 0)),            # GN gamma
            pl.BlockSpec((pdim, 1), lambda g: (0, 0)),            # GN beta
            pl.BlockSpec((no, pdim), lambda g: (0, 0)),           # W_qkv (scaled, bf16)
            pl.BlockSpec((no, 1), lambda g: (0, 0)),              # b_qkv (scaled)
            pl.BlockSpec((dim, pdim), lambda g: (0, 0)),          # W_proj[:, :pdim]
            pl.BlockSpec((dim, dim - pdim), lambda g: (0, 0)),    # W_proj[:, pdim:]
            pl.BlockSpec((dim, 1), lambda g: (0, 0)),             # b_proj
        ],
        out_specs=pl.BlockSpec((bs, dim, N), lambda g: (g, 0, 0)),
        compiler_params=pltpu.CompilerParams(dimension_semantics=("parallel",)),
        cost_estimate=pl.CostEstimate(flops=flops,
                                      transcendentals=transcendentals,
                                      bytes_accessed=bytes_accessed),
    )(x, gng, gnb, wqkv_s, bqkv_s, wp1, wp2, bp)
    return out.reshape(B, dim, H, W)


# --------------------------------------------------------------------------- #
# Deterministic parameter construction (Conv2dNorm fused as in .fuse())
# --------------------------------------------------------------------------- #
class KeyGen:
    def __init__(self, key):
        self._key = key

    def __call__(self):
        self._key, sub = jax.random.split(self._key)
        return sub


def _fold_bn(kg, w, cout):
    """Fold BatchNorm2d (random running stats) into 1x1 conv weight w (cout, cin)."""
    gamma = 1.0 + 0.1 * jax.random.normal(kg(), (cout,))
    beta = 0.1 * jax.random.normal(kg(), (cout,))
    mean = 0.1 * jax.random.normal(kg(), (cout,))
    var = jax.random.uniform(kg(), (cout,), minval=0.5, maxval=1.5)
    scale = gamma / jnp.sqrt(var + BN_EPS)
    return (w * scale[:, None]).astype(jnp.float32), (beta - mean * scale).astype(jnp.float32)


def build_params(key, dim, qk_dim, pdim):
    kg = KeyGen(key)
    qkv_w = 0.1 * jax.random.normal(kg(), (2 * qk_dim + pdim, pdim))
    proj_w = 0.1 * jax.random.normal(kg(), (dim, dim))
    return {
        "gn_gamma": (1.0 + 0.1 * jax.random.normal(kg(), (pdim,))).astype(jnp.float32),
        "gn_beta": (0.1 * jax.random.normal(kg(), (pdim,))).astype(jnp.float32),
        "qkv": _fold_bn(kg, qkv_w, 2 * qk_dim + pdim),
        # NOTE: module initializes proj BN weight to 0; random BN stats used so the
        # test output is non-trivial (fusion semantics are identical).
        "proj": _fold_bn(kg, proj_w, dim),
    }


# --------------------------------------------------------------------------- #
# Pure-JAX f32 reference (mirrors PyTorch SHSA.forward with fused Conv+BN)
# --------------------------------------------------------------------------- #
def shsa_reference(x, params, *, dim, qk_dim, pdim):
    B, C, H, W = x.shape
    N = H * W
    x1, x2 = x[:, :pdim], x[:, pdim:]
    mean = jnp.mean(x1, axis=(1, 2, 3), keepdims=True)
    var = jnp.mean((x1 - mean) ** 2, axis=(1, 2, 3), keepdims=True)
    x1 = (x1 - mean) / jnp.sqrt(var + GN_EPS)
    x1 = x1 * params["gn_gamma"].reshape(1, pdim, 1, 1) + params["gn_beta"].reshape(1, pdim, 1, 1)
    wqkv, bqkv = params["qkv"]
    qkv = jnp.einsum("oc,bchw->bohw", wqkv, x1) + bqkv.reshape(1, -1, 1, 1)
    q = qkv[:, :qk_dim].reshape(B, qk_dim, N)
    k = qkv[:, qk_dim:2 * qk_dim].reshape(B, qk_dim, N)
    v = qkv[:, 2 * qk_dim:].reshape(B, pdim, N)
    attn = jnp.einsum("bci,bcj->bij", q, k) * (qk_dim ** -0.5)
    attn = jax.nn.softmax(attn, axis=-1)
    x1o = jnp.einsum("bcj,bij->bci", v, attn).reshape(B, pdim, H, W)
    xc = jnp.maximum(jnp.concatenate([x1o, x2], axis=1), 0.0)
    wp, bp = params["proj"]
    return jnp.einsum("oc,bchw->bohw", wp, xc) + bp.reshape(1, -1, 1, 1)


# --------------------------------------------------------------------------- #
if __name__ == "__main__":
    B, dim, qk_dim, pdim, H, W = 2, 64, 16, 32, 16, 16   # N = H*W = 256 (lane-dense)

    root = jax.random.PRNGKey(0)
    pkey, xkey = jax.random.split(root)
    params = build_params(pkey, dim, qk_dim, pdim)
    x = jax.random.normal(xkey, (B, dim, H, W), dtype=jnp.float32)   # NCHW like PyTorch

    fwd = jax.jit(functools.partial(shsa_forward, dim=dim, qk_dim=qk_dim, pdim=pdim))
    y = fwd(x, params)
    jax.block_until_ready(y)

    y_ref = shsa_reference(x, params, dim=dim, qk_dim=qk_dim, pdim=pdim)
    assert y.shape == (B, dim, H, W), y.shape
    assert bool(jnp.all(jnp.isfinite(y)))
    rel_err = float(jnp.max(jnp.abs(y - y_ref)) / (jnp.max(jnp.abs(y_ref)) + 1e-6))
    assert rel_err < 2e-2, f"relative error too large: {rel_err}"
    print("KERNEL_OK")
</pallas_src>

<mosaic_0001>
module attributes {stable_mosaic.version = 11 : i64} {
  func.func @_shsa_fused_kernel(%arg0: i32, %arg1: memref<2x64x256xf32, #tpu.memory_space<vmem>>, %arg2: memref<32x1xf32, #tpu.memory_space<vmem>>, %arg3: memref<32x1xf32, #tpu.memory_space<vmem>>, %arg4: memref<64x32xbf16, #tpu.memory_space<vmem>>, %arg5: memref<64x1xf32, #tpu.memory_space<vmem>>, %arg6: memref<64x32xbf16, #tpu.memory_space<vmem>>, %arg7: memref<64x32xbf16, #tpu.memory_space<vmem>>, %arg8: memref<64x1xf32, #tpu.memory_space<vmem>>, %arg9: memref<2x64x256xf32, #tpu.memory_space<vmem>>) attributes {dimension_semantics = [#tpu.dimension_semantics<parallel>], iteration_bounds = array<i64: 1>, scalar_prefetch = 0 : i64, scratch_operands = 0 : i64, tpu.core_type = #tpu.core_type<tc>, window_params = [{transform_indices = @transform_0, window_bounds = array<i64: 2, 64, 256>}, {pipeline_mode = #tpu.pipeline_mode<synchronous>, transform_indices = @transform_1, window_bounds = array<i64: 32, 1>}, {pipeline_mode = #tpu.pipeline_mode<synchronous>, transform_indices = @transform_2, window_bounds = array<i64: 32, 1>}, {pipeline_mode = #tpu.pipeline_mode<synchronous>, transform_indices = @transform_3, window_bounds = array<i64: 64, 32>}, {pipeline_mode = #tpu.pipeline_mode<synchronous>, transform_indices = @transform_4, window_bounds = array<i64: 64, 1>}, {pipeline_mode = #tpu.pipeline_mode<synchronous>, transform_indices = @transform_5, window_bounds = array<i64: 64, 32>}, {pipeline_mode = #tpu.pipeline_mode<synchronous>, transform_indices = @transform_6, window_bounds = array<i64: 64, 32>}, {pipeline_mode = #tpu.pipeline_mode<synchronous>, transform_indices = @transform_7, window_bounds = array<i64: 64, 1>}, {transform_indices = @transform_8, window_bounds = array<i64: 2, 64, 256>}]} {
    %c0 = arith.constant 0 : index
    %c0_0 = arith.constant 0 : index
    %0 = vector.load %arg2[%c0, %c0_0] : memref<32x1xf32, #tpu.memory_space<vmem>>, vector<32x1xf32>
    %c0_1 = arith.constant 0 : index
    %c0_2 = arith.constant 0 : index
    %1 = vector.load %arg3[%c0_1, %c0_2] : memref<32x1xf32, #tpu.memory_space<vmem>>, vector<32x1xf32>
    %c0_3 = arith.constant 0 : index
    %c0_4 = arith.constant 0 : index
    %2 = vector.load %arg4[%c0_3, %c0_4] : memref<64x32xbf16, #tpu.memory_space<vmem>>, vector<64x32xbf16>
    %c0_5 = arith.constant 0 : index
    %c0_6 = arith.constant 0 : index
    %3 = vector.load %arg5[%c0_5, %c0_6] : memref<64x1xf32, #tpu.memory_space<vmem>>, vector<64x1xf32>
    %c0_7 = arith.constant 0 : index
    %c0_8 = arith.constant 0 : index
    %4 = vector.load %arg6[%c0_7, %c0_8] : memref<64x32xbf16, #tpu.memory_space<vmem>>, vector<64x32xbf16>
    %c0_9 = arith.constant 0 : index
    %c0_10 = arith.constant 0 : index
    %5 = vector.load %arg7[%c0_9, %c0_10] : memref<64x32xbf16, #tpu.memory_space<vmem>>, vector<64x32xbf16>
    %c0_11 = arith.constant 0 : index
    %c0_12 = arith.constant 0 : index
    %6 = vector.load %arg8[%c0_11, %c0_12] : memref<64x1xf32, #tpu.memory_space<vmem>>, vector<64x1xf32>
    %c0_13 = arith.constant 0 : index
    %c0_14 = arith.constant 0 : index
    %c0_15 = arith.constant 0 : index
    %7 = vector.load %arg1[%c0_13, %c0_14, %c0_15] : memref<2x64x256xf32, #tpu.memory_space<vmem>>, vector<1x64x256xf32>
    %8 = vector.shape_cast %7 : vector<1x64x256xf32> to vector<64x256xf32>
    %9 = vector.extract_strided_slice %8 {offsets = [0, 0], sizes = [32, 256], strides = [1, 1]} : vector<64x256xf32> to vector<32x256xf32>
    %10 = vector.extract_strided_slice %8 {offsets = [32, 0], sizes = [32, 256], strides = [1, 1]} : vector<64x256xf32> to vector<32x256xf32>
    %11 = vector.shape_cast %9 : vector<32x256xf32> to vector<1x32x256xf32>
    %cst = arith.constant dense<0.000000e+00> : vector<1xf32>
    %12 = vector.multi_reduction <add>, %11, %cst [1, 2] : vector<1x32x256xf32> to vector<1xf32>
    %13 = vector.shape_cast %12 : vector<1xf32> to vector<1x1x1xf32>
    %14 = vector.extract %13[0, 0, 0] : f32 from vector<1x1x1xf32>
    %cst_16 = arith.constant 8.192000e+03 : f32
    %15 = arith.divf %14, %cst_16 : f32
    %16 = arith.mulf %9, %9 : vector<32x256xf32>
    %17 = vector.shape_cast %16 : vector<32x256xf32> to vector<1x32x256xf32>
    %cst_17 = arith.constant dense<0.000000e+00> : vector<1xf32>
    %18 = vector.multi_reduction <add>, %17, %cst_17 [1, 2] : vector<1x32x256xf32> to vector<1xf32>
    %19 = vector.shape_cast %18 : vector<1xf32> to vector<1x1x1xf32>
    %20 = vector.extract %19[0, 0, 0] : f32 from vector<1x1x1xf32>
    %cst_18 = arith.constant 8.192000e+03 : f32
    %21 = arith.divf %20, %cst_18 : f32
    %22 = arith.mulf %15, %15 : f32
    %23 = arith.subf %21, %22 : f32
    %24 = vector.broadcast %15 : f32 to vector<32x256xf32>
    %25 = arith.subf %9, %24 : vector<32x256xf32>
    %cst_19 = arith.constant 9.99999974E-6 : f32
    %26 = arith.addf %23, %cst_19 : f32
    %27 = math.rsqrt %26 : f32
    %28 = vector.broadcast %27 : f32 to vector<32x256xf32>
    %29 = arith.mulf %25, %28 : vector<32x256xf32>
    %30 = vector.broadcast %0 : vector<32x1xf32> to vector<32x256xf32>
    %31 = arith.mulf %29, %30 : vector<32x256xf32>
    %32 = vector.broadcast %1 : vector<32x1xf32> to vector<32x256xf32>
    %33 = arith.addf %31, %32 : vector<32x256xf32>
    %34 = arith.truncf %33 : vector<32x256xf32> to vector<32x256xbf16>
    %cst_20 = arith.constant dense<0.000000e+00> : vector<64x256xf32>
    %35 = tpu.matmul %2, %34, %cst_20 {dimension_numbers = #tpu.dot_dimension_numbers<[1], [0], [0], [1], [0, 0, 1, 1], [], []>} : vector<64x32xbf16>, vector<32x256xbf16>, vector<64x256xf32> -> vector<64x256xf32>
    %36 = vector.broadcast %3 : vector<64x1xf32> to vector<64x256xf32>
    %37 = arith.addf %35, %36 : vector<64x256xf32>
    %38 = vector.extract_strided_slice %37 {offsets = [0, 0], sizes = [16, 256], strides = [1, 1]} : vector<64x256xf32> to vector<16x256xf32>
    %39 = arith.truncf %38 : vector<16x256xf32> to vector<16x256xbf16>
    %40 = vector.extract_strided_slice %37 {offsets = [16, 0], sizes = [16, 256], strides = [1, 1]} : vector<64x256xf32> to vector<16x256xf32>
    %41 = arith.truncf %40 : vector<16x256xf32> to vector<16x256xbf16>
    %42 = vector.extract_strided_slice %37 {offsets = [32, 0], sizes = [32, 256], strides = [1, 1]} : vector<64x256xf32> to vector<32x256xf32>
    %43 = arith.truncf %42 : vector<32x256xf32> to vector<32x256xbf16>
    %cst_21 = arith.constant dense<0.000000e+00> : vector<256x256xf32>
    %44 = tpu.matmul %41, %39, %cst_21 {dimension_numbers = #tpu.dot_dimension_numbers<[0], [0], [1], [1], [0, 1, 1, 1], [], []>} : vector<16x256xbf16>, vector<16x256xbf16>, vector<256x256xf32> -> vector<256x256xf32>
    %cst_22 = arith.constant dense<0xFF800000> : vector<256xf32>
    %45 = vector.multi_reduction <maximumf>, %44, %cst_22 [0] : vector<256x256xf32> to vector<256xf32>
    %46 = vector.shape_cast %45 : vector<256xf32> to vector<1x256xf32>
    %47 = vector.broadcast %46 : vector<1x256xf32> to vector<256x256xf32>
    %48 = arith.subf %44, %47 : vector<256x256xf32>
    %49 = math.exp %48 : vector<256x256xf32>
    %cst_23 = arith.constant dense<0.000000e+00> : vector<256xf32>
    %50 = vector.multi_reduction <add>, %49, %cst_23 [0] : vector<256x256xf32> to vector<256xf32>
    %51 = vector.shape_cast %50 : vector<256xf32> to vector<1x256xf32>
    %52 = arith.truncf %49 : vector<256x256xf32> to vector<256x256xbf16>
    %cst_24 = arith.constant dense<0.000000e+00> : vector<32x256xf32>
    %53 = tpu.matmul %43, %52, %cst_24 {dimension_numbers = #tpu.dot_dimension_numbers<[1], [0], [0], [1], [0, 0, 1, 1], [], []>} : vector<32x256xbf16>, vector<256x256xbf16>, vector<32x256xf32> -> vector<32x256xf32>
    %54 = tpu.reciprocal %51 {approx = true} : vector<1x256xf32> -> vector<1x256xf32>
    %55 = vector.broadcast %54 : vector<1x256xf32> to vector<32x256xf32>
    %56 = arith.mulf %53, %55 : vector<32x256xf32>
    %cst_25 = arith.constant 0.000000e+00 : f32
    %57 = vector.broadcast %cst_25 : f32 to vector<32x256xf32>
    %58 = arith.maximumf %56, %57 : vector<32x256xf32>
    %59 = arith.truncf %58 : vector<32x256xf32> to vector<32x256xbf16>
    %cst_26 = arith.constant 0.000000e+00 : f32
    %60 = vector.broadcast %cst_26 : f32 to vector<32x256xf32>
    %61 = arith.maximumf %10, %60 : vector<32x256xf32>
    %62 = arith.truncf %61 : vector<32x256xf32> to vector<32x256xbf16>
    %cst_27 = arith.constant dense<0.000000e+00> : vector<64x256xf32>
    %63 = tpu.matmul %4, %59, %cst_27 {dimension_numbers = #tpu.dot_dimension_numbers<[1], [0], [0], [1], [0, 0, 1, 1], [], []>} : vector<64x32xbf16>, vector<32x256xbf16>, vector<64x256xf32> -> vector<64x256xf32>
    %cst_28 = arith.constant dense<0.000000e+00> : vector<64x256xf32>
    %64 = tpu.matmul %5, %62, %cst_28 {dimension_numbers = #tpu.dot_dimension_numbers<[1], [0], [0], [1], [0, 0, 1, 1], [], []>} : vector<64x32xbf16>, vector<32x256xbf16>, vector<64x256xf32> -> vector<64x256xf32>
    %65 = arith.addf %63, %64 : vector<64x256xf32>
    %66 = vector.broadcast %6 : vector<64x1xf32> to vector<64x256xf32>
    %67 = arith.addf %65, %66 : vector<64x256xf32>
    %c0_29 = arith.constant 0 : index
    %c0_30 = arith.constant 0 : index
    %c0_31 = arith.constant 0 : index
    %68 = vector.load %arg9[%c0_29, %c0_30, %c0_31] : memref<2x64x256xf32, #tpu.memory_space<vmem>>, vector<1x64x256xf32>
    %69 = vector.shape_cast %68 : vector<1x64x256xf32> to vector<64x256xf32>
    %70 = vector.shape_cast %67 : vector<64x256xf32> to vector<1x64x256xf32>
    tpu.vector_store %arg9[%c0_29, %c0_30, %c0_31], %70 {strides = array<i32>} : memref<2x64x256xf32, #tpu.memory_space<vmem>>, vector<1x64x256xf32>,
    %c1 = arith.constant 1 : index
    %c0_32 = arith.constant 0 : index
    %c0_33 = arith.constant 0 : index
    %71 = vector.load %arg1[%c1, %c0_32, %c0_33] : memref<2x64x256xf32, #tpu.memory_space<vmem>>, vector<1x64x256xf32>
    %72 = vector.shape_cast %71 : vector<1x64x256xf32> to vector<64x256xf32>
    %73 = vector.extract_strided_slice %72 {offsets = [0, 0], sizes = [32, 256], strides = [1, 1]} : vector<64x256xf32> to vector<32x256xf32>
    %74 = vector.extract_strided_slice %72 {offsets = [32, 0], sizes = [32, 256], strides = [1, 1]} : vector<64x256xf32> to vector<32x256xf32>
    %75 = vector.shape_cast %73 : vector<32x256xf32> to vector<1x32x256xf32>
    %cst_34 = arith.constant dense<0.000000e+00> : vector<1xf32>
    %76 = vector.multi_reduction <add>, %75, %cst_34 [1, 2] : vector<1x32x256xf32> to vector<1xf32>
    %77 = vector.shape_cast %76 : vector<1xf32> to vector<1x1x1xf32>
    %78 = vector.extract %77[0, 0, 0] : f32 from vector<1x1x1xf32>
    %cst_35 = arith.constant 8.192000e+03 : f32
    %79 = arith.divf %78, %cst_35 : f32
    %80 = arith.mulf %73, %73 : vector<32x256xf32>
    %81 = vector.shape_cast %80 : vector<32x256xf32> to vector<1x32x256xf32>
    %cst_36 = arith.constant dense<0.000000e+00> : vector<1xf32>
    %82 = vector.multi_reduction <add>, %81, %cst_36 [1, 2] : vector<1x32x256xf32> to vector<1xf32>
    %83 = vector.shape_cast %82 : vector<1xf32> to vector<1x1x1xf32>
    %84 = vector.extract %83[0, 0, 0] : f32 from vector<1x1x1xf32>
    %cst_37 = arith.constant 8.192000e+03 : f32
    %85 = arith.divf %84, %cst_37 : f32
    %86 = arith.mulf %79, %79 : f32
    %87 = arith.subf %85, %86 : f32
    %88 = vector.broadcast %79 : f32 to vector<32x256xf32>
    %89 = arith.subf %73, %88 : vector<32x256xf32>
    %cst_38 = arith.constant 9.99999974E-6 : f32
    %90 = arith.addf %87, %cst_38 : f32
    %91 = math.rsqrt %90 : f32
    %92 = vector.broadcast %91 : f32 to vector<32x256xf32>
    %93 = arith.mulf %89, %92 : vector<32x256xf32>
    %94 = vector.broadcast %0 : vector<32x1xf32> to vector<32x256xf32>
    %95 = arith.mulf %93, %94 : vector<32x256xf32>
    %96 = vector.broadcast %1 : vector<32x1xf32> to vector<32x256xf32>
    %97 = arith.addf %95, %96 : vector<32x256xf32>
    %98 = arith.truncf %97 : vector<32x256xf32> to vector<32x256xbf16>
    %cst_39 = arith.constant dense<0.000000e+00> : vector<64x256xf32>
    %99 = tpu.matmul %2, %98, %cst_39 {dimension_numbers = #tpu.dot_dimension_numbers<[1], [0], [0], [1], [0, 0, 1, 1], [], []>} : vector<64x32xbf16>, vector<32x256xbf16>, vector<64x256xf32> -> vector<64x256xf32>
    %100 = vector.broadcast %3 : vector<64x1xf32> to vector<64x256xf32>
    %101 = arith.addf %99, %100 : vector<64x256xf32>
    %102 = vector.extract_strided_slice %101 {offsets = [0, 0], sizes = [16, 256], strides = [1, 1]} : vector<64x256xf32> to vector<16x256xf32>
    %103 = arith.truncf %102 : vector<16x256xf32> to vector<16x256xbf16>
    %104 = vector.extract_strided_slice %101 {offsets = [16, 0], sizes = [16, 256], strides = [1, 1]} : vector<64x256xf32> to vector<16x256xf32>
    %105 = arith.truncf %104 : vector<16x256xf32> to vector<16x256xbf16>
    %106 = vector.extract_strided_slice %101 {offsets = [32, 0], sizes = [32, 256], strides = [1, 1]} : vector<64x256xf32> to vector<32x256xf32>
    %107 = arith.truncf %106 : vector<32x256xf32> to vector<32x256xbf16>
    %cst_40 = arith.constant dense<0.000000e+00> : vector<256x256xf32>
    %108 = tpu.matmul %105, %103, %cst_40 {dimension_numbers = #tpu.dot_dimension_numbers<[0], [0], [1], [1], [0, 1, 1, 1], [], []>} : vector<16x256xbf16>, vector<16x256xbf16>, vector<256x256xf32> -> vector<256x256xf32>
    %cst_41 = arith.constant dense<0xFF800000> : vector<256xf32>
    %109 = vector.multi_reduction <maximumf>, %108, %cst_41 [0] : vector<256x256xf32> to vector<256xf32>
    %110 = vector.shape_cast %109 : vector<256xf32> to vector<1x256xf32>
    %111 = vector.broadcast %110 : vector<1x256xf32> to vector<256x256xf32>
    %112 = arith.subf %108, %111 : vector<256x256xf32>
    %113 = math.exp %112 : vector<256x256xf32>
    %cst_42 = arith.constant dense<0.000000e+00> : vector<256xf32>
    %114 = vector.multi_reduction <add>, %113, %cst_42 [0] : vector<256x256xf32> to vector<256xf32>
    %115 = vector.shape_cast %114 : vector<256xf32> to vector<1x256xf32>
    %116 = arith.truncf %113 : vector<256x256xf32> to vector<256x256xbf16>
    %cst_43 = arith.constant dense<0.000000e+00> : vector<32x256xf32>
    %117 = tpu.matmul %107, %116, %cst_43 {dimension_numbers = #tpu.dot_dimension_numbers<[1], [0], [0], [1], [0, 0, 1, 1], [], []>} : vector<32x256xbf16>, vector<256x256xbf16>, vector<32x256xf32> -> vector<32x256xf32>
    %118 = tpu.reciprocal %115 {approx = true} : vector<1x256xf32> -> vector<1x256xf32>
    %119 = vector.broadcast %118 : vector<1x256xf32> to vector<32x256xf32>
    %120 = arith.mulf %117, %119 : vector<32x256xf32>
    %cst_44 = arith.constant 0.000000e+00 : f32
    %121 = vector.broadcast %cst_44 : f32 to vector<32x256xf32>
    %122 = arith.maximumf %120, %121 : vector<32x256xf32>
    %123 = arith.truncf %122 : vector<32x256xf32> to vector<32x256xbf16>
    %cst_45 = arith.constant 0.000000e+00 : f32
    %124 = vector.broadcast %cst_45 : f32 to vector<32x256xf32>
    %125 = arith.maximumf %74, %124 : vector<32x256xf32>
    %126 = arith.truncf %125 : vector<32x256xf32> to vector<32x256xbf16>
    %cst_46 = arith.constant dense<0.000000e+00> : vector<64x256xf32>
    %127 = tpu.matmul %4, %123, %cst_46 {dimension_numbers = #tpu.dot_dimension_numbers<[1], [0], [0], [1], [0, 0, 1, 1], [], []>} : vector<64x32xbf16>, vector<32x256xbf16>, vector<64x256xf32> -> vector<64x256xf32>
    %cst_47 = arith.constant dense<0.000000e+00> : vector<64x256xf32>
    %128 = tpu.matmul %5, %126, %cst_47 {dimension_numbers = #tpu.dot_dimension_numbers<[1], [0], [0], [1], [0, 0, 1, 1], [], []>} : vector<64x32xbf16>, vector<32x256xbf16>, vector<64x256xf32> -> vector<64x256xf32>
    %129 = arith.addf %127, %128 : vector<64x256xf32>
    %130 = vector.broadcast %6 : vector<64x1xf32> to vector<64x256xf32>
    %131 = arith.addf %129, %130 : vector<64x256xf32>
    %c1_48 = arith.constant 1 : index
    %c0_49 = arith.constant 0 : index
    %c0_50 = arith.constant 0 : index
    %132 = vector.load %arg9[%c1_48, %c0_49, %c0_50] : memref<2x64x256xf32, #tpu.memory_space<vmem>>, vector<1x64x256xf32>
    %133 = vector.shape_cast %132 : vector<1x64x256xf32> to vector<64x256xf32>
    %134 = vector.shape_cast %131 : vector<64x256xf32> to vector<1x64x256xf32>
    tpu.vector_store %arg9[%c1_48, %c0_49, %c0_50], %134 {strides = array<i32>} : memref<2x64x256xf32, #tpu.memory_space<vmem>>, vector<1x64x256xf32>,
    return
  }
  func.func @transform_0(%arg0: i32) -> (i32, i32, i32) {
    %c0_i32 = arith.constant 0 : i32
    %c0_i32_0 = arith.constant 0 : i32
    %c0_i32_1 = arith.constant 0 : i32
    return %arg0, %c0_i32, %c0_i32_0 : i32, i32, i32
  }
  func.func @transform_1(%arg0: i32) -> (i32, i32) {
    %c0_i32 = arith.constant 0 : i32
    %c0_i32_0 = arith.constant 0 : i32
    %c0_i32_1 = arith.constant 0 : i32
    return %c0_i32, %c0_i32_0 : i32, i32
  }
  func.func @transform_2(%arg0: i32) -> (i32, i32) {
    %c0_i32 = arith.constant 0 : i32
    %c0_i32_0 = arith.constant 0 : i32
    %c0_i32_1 = arith.constant 0 : i32
    return %c0_i32, %c0_i32_0 : i32, i32
  }
  func.func @transform_3(%arg0: i32) -> (i32, i32) {
    %c0_i32 = arith.constant 0 : i32
    %c0_i32_0 = arith.constant 0 : i32
    %c0_i32_1 = arith.constant 0 : i32
    return %c0_i32, %c0_i32_0 : i32, i32
  }
  func.func @transform_4(%arg0: i32) -> (i32, i32) {
    %c0_i32 = arith.constant 0 : i32
    %c0_i32_0 = arith.constant 0 : i32
    %c0_i32_1 = arith.constant 0 : i32
    return %c0_i32, %c0_i32_0 : i32, i32
  }
  func.func @transform_5(%arg0: i32) -> (i32, i32) {
    %c0_i32 = arith.constant 0 : i32
    %c0_i32_0 = arith.constant 0 : i32
    %c0_i32_1 = arith.constant 0 : i32
    return %c0_i32, %c0_i32_0 : i32, i32
  }
  func.func @transform_6(%arg0: i32) -> (i32, i32) {
    %c0_i32 = arith.constant 0 : i32
    %c0_i32_0 = arith.constant 0 : i32
    %c0_i32_1 = arith.constant 0 : i32
    return %c0_i32, %c0_i32_0 : i32, i32
  }
  func.func @transform_7(%arg0: i32) -> (i32, i32) {
    %c0_i32 = arith.constant 0 : i32
    %c0_i32_0 = arith.constant 0 : i32
    %c0_i32_1 = arith.constant 0 : i32
    return %c0_i32, %c0_i32_0 : i32, i32
  }
  func.func @transform_8(%arg0: i32) -> (i32, i32, i32) {
    %c0_i32 = arith.constant 0 : i32
    %c0_i32_0 = arith.constant 0 : i32
    %c0_i32_1 = arith.constant 0 : i32
    return %arg0, %c0_i32, %c0_i32_0 : i32, i32, i32
  }
}

</mosaic_0001>

<llo_original>
// kernel: shsa_forward.1
$region0: #{shsa_forward.1}
  #allocation0 [shape = 'u32[]', space=smem, size = 0x4, offset = 0x4, fixed_abs, tag = 'smem constant byte address 0x4 - core index']
  #allocation1 [shape = 'u32[144,128]{1,0:T(1,128)}', space=vmem, size = 0x12000, scoped, tag = 'internal scratch']
  %s0 = inlined_call_operand.vmem [shape: f32[2,64,256], index: 0, kind: input, shape index: {}]
  %s1 = inlined_call_operand.vmem [shape: f32[32,1], index: 1, kind: input, shape index: {}]
  %s2 = inlined_call_operand.vmem [shape: f32[32,1], index: 2, kind: input, shape index: {}]
  %s3 = inlined_call_operand.vmem [shape: bf16[64,32], index: 3, kind: input, shape index: {}]
  %s4 = inlined_call_operand.vmem [shape: f32[64,1], index: 4, kind: input, shape index: {}]
  %s5 = inlined_call_operand.vmem [shape: bf16[64,32], index: 5, kind: input, shape index: {}]
  %s6 = inlined_call_operand.vmem [shape: bf16[64,32], index: 6, kind: input, shape index: {}]
  %s7 = inlined_call_operand.vmem [shape: f32[64,1], index: 7, kind: input, shape index: {}]
  %s8 = inlined_call_operand.vmem [shape: f32[2,64,256], index: 8, kind: output, shape index: {}]
  %s9 = sld [smem:[#allocation0]]
  $region42: #{shsa_forward.1} parent=0
    _
  %s11 = ssub.s32 1, %s9
  %s12 = scalar_select 0, %s11, %s9
  // Predicated region
  $region2: #{shsa_forward.1} parent=0 // pred_check
    _
  $region3: #{shsa_forward.1} parent=0 // pred_check_branch
    %14 = sbr.rel (0) target = $region5
  $region4: #{shsa_forward.1} parent=0 // pred_region
    _
  $region5: #{shsa_forward.1} parent=0 // pred_fallthru
    _
  // Predicated region
  $region6: #{shsa_forward.1} parent=0 // pred_check
    _
  $region7: #{shsa_forward.1} parent=0 // pred_check_branch
    %16 = sbr.rel (0) target = $region9
  $region8: #{shsa_forward.1} parent=0 // pred_region
    _
  $region9: #{shsa_forward.1} parent=0 // pred_fallthru
    _
  // Predicated region
  $region10: #{shsa_forward.1} parent=0 // pred_check
    _
  $region11: #{shsa_forward.1} parent=0 // pred_check_branch
    %18 = sbr.rel (0) target = $region13
  $region12: #{shsa_forward.1} parent=0 // pred_region
    _
  $region13: #{shsa_forward.1} parent=0 // pred_fallthru
    _
  // Predicated region
  $region14: #{shsa_forward.1} parent=0 // pred_check
    _
  $region15: #{shsa_forward.1} parent=0 // pred_check_branch
    %20 = sbr.rel (0) target = $region17
  $region16: #{shsa_forward.1} parent=0 // pred_region
    _
  $region17: #{shsa_forward.1} parent=0 // pred_fallthru
    _
  // Predicated region
  $region18: #{shsa_forward.1} parent=0 // pred_check
    _
  $region19: #{shsa_forward.1} parent=0 // pred_check_branch
    %22 = sbr.rel (0) target = $region21
  $region20: #{shsa_forward.1} parent=0 // pred_region
    _
  $region21: #{shsa_forward.1} parent=0 // pred_fallthru
    _
  // Predicated region
  $region22: #{shsa_forward.1} parent=0 // pred_check
    _
  $region23: #{shsa_forward.1} parent=0 // pred_check_branch
    %24 = sbr.rel (0) target = $region25
  $region24: #{shsa_forward.1} parent=0 // pred_region
    _
  $region25: #{shsa_forward.1} parent=0 // pred_fallthru
    _
  // Predicated region
  $region26: #{shsa_forward.1} parent=0 // pred_check
    _
  $region27: #{shsa_forward.1} parent=0 // pred_check_branch
    %26 = sbr.rel (0) target = $region29
  $region28: #{shsa_forward.1} parent=0 // pred_region
    _
  $region29: #{shsa_forward.1} parent=0 // pred_fallthru
    _
  // Predicated region
  $region30: #{shsa_forward.1} parent=0 // pred_check
    _
  $region31: #{shsa_forward.1} parent=0 // pred_check_branch
    %28 = sbr.rel (0) target = $region33
  $region32: #{shsa_forward.1} parent=0 // pred_region
    _
  $region33: #{shsa_forward.1} parent=0 // pred_fallthru
    _
  %v30 = vld [vmem:[%s1] sm:$0xff]
  %v31 = vld [vmem:[%s1 + $0x8] sm:$0xff]
  %v32 = vld [vmem:[%s1 + $0x10] sm:$0xff]
  %v33 = vld [vmem:[%s1 + $0x18] sm:$0xff]
  %v34 = vld [vmem:[%s2] sm:$0xff]
  %v35 = vld [vmem:[%s2 + $0x8] sm:$0xff]
  %v36 = vld [vmem:[%s2 + $0x10] sm:$0xff]
  %v37 = vld [vmem:[%s2 + $0x18] sm:$0xff]
  %v38 = vld [vmem:[%s3] sm:$0xf]
  %v39 = vld [vmem:[%s3 + $0x4] sm:$0xf]
  %v40 = vld [vmem:[%s3 + $0x8] sm:$0xf]
  %v41 = vld [vmem:[%s3 + $0xc] sm:$0xf]
  %v42 = vld [vmem:[%s3 + $0x10] sm:$0xf]
  %v43 = vld [vmem:[%s3 + $0x14] sm:$0xf]
  %v44 = vld [vmem:[%s3 + $0x18] sm:$0xf]
  %v45 = vld [vmem:[%s3 + $0x1c] sm:$0xf]
  %v46 = vld [vmem:[%s4] sm:$0xff]
  %v47 = vld [vmem:[%s4 + $0x8] sm:$0xff]
  %v48 = vld [vmem:[%s4 + $0x10] sm:$0xff]
  %v49 = vld [vmem:[%s4 + $0x18] sm:$0xff]
  %v50 = vld [vmem:[%s4 + $0x20] sm:$0xff]
  %v51 = vld [vmem:[%s4 + $0x28] sm:$0xff]
  %v52 = vld [vmem:[%s4 + $0x30] sm:$0xff]
  %v53 = vld [vmem:[%s4 + $0x38] sm:$0xff]
  %v54 = vld [vmem:[%s5] sm:$0xf]
  %v55 = vld [vmem:[%s5 + $0x4] sm:$0xf]
  %v56 = vld [vmem:[%s5 + $0x8] sm:$0xf]
  %v57 = vld [vmem:[%s5 + $0xc] sm:$0xf]
  %v58 = vld [vmem:[%s5 + $0x10] sm:$0xf]
  %v59 = vld [vmem:[%s5 + $0x14] sm:$0xf]
  %v60 = vld [vmem:[%s5 + $0x18] sm:$0xf]
  %v61 = vld [vmem:[%s5 + $0x1c] sm:$0xf]
  %v62 = vld [vmem:[%s6] sm:$0xf]
  %v63 = vld [vmem:[%s6 + $0x4] sm:$0xf]
  %v64 = vld [vmem:[%s6 + $0x8] sm:$0xf]
  %v65 = vld [vmem:[%s6 + $0xc] sm:$0xf]
  %v66 = vld [vmem:[%s6 + $0x10] sm:$0xf]
  %v67 = vld [vmem:[%s6 + $0x14] sm:$0xf]
  %v68 = vld [vmem:[%s6 + $0x18] sm:$0xf]
  %v69 = vld [vmem:[%s6 + $0x1c] sm:$0xf]
  %v70 = vld [vmem:[%s7] sm:$0xff]
  %v71 = vld [vmem:[%s7 + $0x8] sm:$0xff]
  %v72 = vld [vmem:[%s7 + $0x10] sm:$0xff]
  %v73 = vld [vmem:[%s7 + $0x18] sm:$0xff]
  %v74 = vld [vmem:[%s7 + $0x20] sm:$0xff]
  %v75 = vld [vmem:[%s7 + $0x28] sm:$0xff]
  %v76 = vld [vmem:[%s7 + $0x30] sm:$0xff]
  %v77 = vld [vmem:[%s7 + $0x38] sm:$0xff]
  %v78 = vld [vmem:[%s0] sm:$0xff]
  %v79 = vld [vmem:[%s0 + $0x8] sm:$0xff]
  %v80 = vld [vmem:[%s0 + $0x10] sm:$0xff]
  %v81 = vld [vmem:[%s0 + $0x18] sm:$0xff]
  %v82 = vld [vmem:[%s0 + $0x20] sm:$0xff]
  %v83 = vld [vmem:[%s0 + $0x28] sm:$0xff]
  %v84 = vld [vmem:[%s0 + $0x30] sm:$0xff]
  %v85 = vld [vmem:[%s0 + $0x38] sm:$0xff]
  %v86 = vld [vmem:[%s0 + $0x40] sm:$0xff]
  %v87 = vld [vmem:[%s0 + $0x48] sm:$0xff]
  %v88 = vld [vmem:[%s0 + $0x50] sm:$0xff]
  %v89 = vld [vmem:[%s0 + $0x58] sm:$0xff]
  %v90 = vld [vmem:[%s0 + $0x60] sm:$0xff]
  %v91 = vld [vmem:[%s0 + $0x68] sm:$0xff]
  %v92 = vld [vmem:[%s0 + $0x70] sm:$0xff]
  %v93 = vld [vmem:[%s0 + $0x78] sm:$0xff]
  %v94 = vadd.f32 %v78, %v79
  %v95 = vadd.f32 %v94, %v80
  %v96 = vadd.f32 %v95, %v81
  %v97 = vadd.f32 %v96, %v82
  %v98 = vadd.f32 %v97, %v83
  %v99 = vadd.f32 %v98, %v84
  %v100 = vadd.f32 %v99, %v85
  %101 = vadd.xlane.f32.xlu0 %v100
  %v102 = vpop.xlane.xlu0 %101
  %v103 = vrot.slane %v102, 4
  %v104 = vadd.f32 %v102, %v103
  %v105 = vrot.slane %v104, 2
  %v106 = vadd.f32 %v104, %v105
  %v107 = vrot.slane %v106, 1
  %v108 = vadd.f32 %v106, %v107
  %s109 = vtos %v108
  %v110 = vrcp.pop 8192.0
  %s111 = vtos %v110
  %s112 = smul.f32 %s109, %s111
  %v113 = vmul.f32 %v78, %v78
  %v114 = vmul.f32 %v79, %v79
  %v115 = vmul.f32 %v80, %v80
  %v116 = vmul.f32 %v81, %v81
  %v117 = vmul.f32 %v82, %v82
  %v118 = vmul.f32 %v83, %v83
  %v119 = vmul.f32 %v84, %v84
  %v120 = vmul.f32 %v85, %v85
  %v121 = vadd.f32 %v113, %v114
  %v122 = vadd.f32 %v121, %v115
  %v123 = vadd.f32 %v122, %v116
  %v124 = vadd.f32 %v123, %v117
  %v125 = vadd.f32 %v124, %v118
  %v126 = vadd.f32 %v125, %v119
  %v127 = vadd.f32 %v126, %v120
  %128 = vadd.xlane.f32.xlu0 %v127
  %v129 = vpop.xlane.xlu0 %128
  %v130 = vrot.slane %v129, 4
  %v131 = vadd.f32 %v129, %v130
  %v132 = vrot.slane %v131, 2
  %v133 = vadd.f32 %v131, %v132
  %v134 = vrot.slane %v133, 1
  %v135 = vadd.f32 %v133, %v134
  %s136 = vtos %v135
  %v137 = vrcp.pop 8192.0
  %s138 = vtos %v137
  %s139 = smul.f32 %s136, %s138
  %s140 = smul.f32 %s112, %s112
  %s141 = ssub.f32 %s139, %s140
  %v142 = vstv %s112
  %v143 = vsub.f32 %v78, %v142
  %v144 = vsub.f32 %v79, %v142
  %v145 = vsub.f32 %v80, %v142
  %v146 = vsub.f32 %v81, %v142
  %v147 = vsub.f32 %v82, %v142
  %v148 = vsub.f32 %v83, %v142
  %v149 = vsub.f32 %v84, %v142
  %v150 = vsub.f32 %v85, %v142
  %s151 = sadd.f32 %s141, 1e-05
  %v152 = vstv %s151
  %v153 = vrsqrt.pop %v152
  %s154 = vtos %v153
  %v155 = vstv %s154
  %v156 = vmul.f32 %v143, %v155
  %v157 = vmul.f32 %v144, %v155
  %v158 = vmul.f32 %v145, %v155
  %v159 = vmul.f32 %v146, %v155
  %v160 = vmul.f32 %v147, %v155
  %v161 = vmul.f32 %v148, %v155
  %v162 = vmul.f32 %v149, %v155
  %v163 = vmul.f32 %v150, %v155
  %165 = vset.pattern.permute.xlu0 0
  %166 = vperm.xlu0 %165, %v30
  %v167 = vpop.permute.xlu0 %166
  %170 = vset.pattern.permute.xlu0 0
  %171 = vperm.xlu0 %170, %v31
  %v172 = vpop.permute.xlu0 %171
  %175 = vset.pattern.permute.xlu0 0
  %176 = vperm.xlu0 %175, %v32
  %v177 = vpop.permute.xlu0 %176
  %180 = vset.pattern.permute.xlu0 0
  %181 = vperm.xlu0 %180, %v33
  %v182 = vpop.permute.xlu0 %181
  %v184 = vmul.f32 %v156, %v167
  %v185 = vmul.f32 %v157, %v167
  %v186 = vmul.f32 %v158, %v172
  %v187 = vmul.f32 %v159, %v172
  %v188 = vmul.f32 %v160, %v177
  %v189 = vmul.f32 %v161, %v177
  %v190 = vmul.f32 %v162, %v182
  %v191 = vmul.f32 %v163, %v182
  %193 = vset.pattern.permute.xlu0 0
  %194 = vperm.xlu0 %193, %v34
  %v195 = vpop.permute.xlu0 %194
  %198 = vset.pattern.permute.xlu0 0
  %199 = vperm.xlu0 %198, %v35
  %v200 = vpop.permute.xlu0 %199
  %203 = vset.pattern.permute.xlu0 0
  %204 = vperm.xlu0 %203, %v36
  %v205 = vpop.permute.xlu0 %204
  %208 = vset.pattern.permute.xlu0 0
  %209 = vperm.xlu0 %208, %v37
  %v210 = vpop.permute.xlu0 %209
  %v212 = vadd.f32 %v184, %v195
  %v213 = vadd.f32 %v185, %v195
  %v214 = vadd.f32 %v186, %v200
  %v215 = vadd.f32 %v187, %v200
  %v216 = vadd.f32 %v188, %v205
  %v217 = vadd.f32 %v189, %v205
  %v218 = vadd.f32 %v190, %v210
  %v219 = vadd.f32 %v191, %v210
  %v220 = vpack.c.bf16 %v214, %v212
  %v221 = vpack.c.bf16 %v215, %v213
  %v222 = vpack.c.bf16 %v218, %v216
  %v223 = vpack.c.bf16 %v219, %v217
  %225 = vset.pattern.permute.xlu0 0
  %226 = vperm.xlu0 %225, %v46
  %v227 = vpop.permute.xlu0 %226
  %230 = vset.pattern.permute.xlu0 0
  %231 = vperm.xlu0 %230, %v47
  %v232 = vpop.permute.xlu0 %231
  %235 = vset.pattern.permute.xlu0 0
  %236 = vperm.xlu0 %235, %v48
  %v237 = vpop.permute.xlu0 %236
  %240 = vset.pattern.permute.xlu0 0
  %241 = vperm.xlu0 %240, %v49
  %v242 = vpop.permute.xlu0 %241
  %245 = vset.pattern.permute.xlu0 0
  %246 = vperm.xlu0 %245, %v50
  %v247 = vpop.permute.xlu0 %246
  %250 = vset.pattern.permute.xlu0 0
  %251 = vperm.xlu0 %250, %v51
  %v252 = vpop.permute.xlu0 %251
  %255 = vset.pattern.permute.xlu0 0
  %256 = vperm.xlu0 %255, %v52
  %v257 = vpop.permute.xlu0 %256
  %260 = vset.pattern.permute.xlu0 0
  %261 = vperm.xlu0 %260, %v53
  %v262 = vpop.permute.xlu0 %261
  %v272 = vunpack.c.l.b16 %v38
  %v273 = vunpack.c.l.b16 %v39
  %v274 = vunpack.c.l.b16 %v40
  %v275 = vunpack.c.l.b16 %v41
  %v276 = vunpack.c.l.b16 %v42
  %v277 = vunpack.c.l.b16 %v43
  %v278 = vunpack.c.l.b16 %v44
  %v279 = vunpack.c.l.b16 %v45
  %v280 = vpack.c.b16 %v273, %v272
  %v281 = vpack.c.b16 %v275, %v274
  %v282 = vpack.c.b16 %v277, %v276
  %v283 = vpack.c.b16 %v279, %v278
  %vm284 = vcmask 261120
  %v286 = vsel %vm284, %v280, 0
  %v289 = vsel %vm284, %v281, 0
  %v292 = vsel %vm284, %v282, 0
  %v295 = vsel %vm284, %v283, 0
  %297 = vmatprep.subr.bf16.mxu0 %v221
  %298 = vmatpush1.bf16.msra.mxu0 %v220
  %299 = vmatprep.subr.bf16.mxu0 %v223
  %300 = vmatpush1.bf16.msra.mxu0 %v222
  %301 = vmatprep.subr.bf16.mxu0 0
  %302 = vmatpush1.bf16.msra.mxu0 0
  %303 = vmatprep.subr.bf16.mxu0 0
  %304 = vmatpush1.bf16.msra.mxu0 0
  %305 = vmatprep.subr.bf16.mxu0 0
  %306 = vmatpush1.bf16.msra.mxu0 0
  %307 = vmatprep.subr.bf16.mxu0 0
  %308 = vmatpush1.bf16.msra.mxu0 0
  %309 = vmatprep.subr.bf16.mxu0 0
  %310 = vmatpush1.bf16.msra.mxu0 0
  %311 = vmatprep.subr.bf16.mxu0 0
  %312 = vmatpush1.bf16.msra.mxu0 0
  %313 = vmatprep.subr.bf16.mxu0 0
  %314 = vmatpush1.bf16.msra.mxu0 0
  %315 = vmatprep.subr.bf16.mxu0 0
  %316 = vmatpush1.bf16.msra.mxu0 0
  %317 = vmatprep.subr.bf16.mxu0 0
  %318 = vmatpush1.bf16.msra.mxu0 0
  %319 = vmatprep.subr.bf16.mxu0 0
  %320 = vmatpush1.bf16.msra.mxu0 0
  %321 = vmatprep.subr.bf16.mxu0 0
  %322 = vmatpush1.bf16.msra.mxu0 0
  %323 = vmatprep.subr.bf16.mxu0 0
  %324 = vmatpush1.bf16.msra.mxu0 0
  %325 = vmatprep.subr.bf16.mxu0 0
  %326 = vmatpush1.bf16.msra.mxu0 0
  %327 = vmatprep.subr.bf16.mxu0 0
  %328 = vmatpush1.bf16.msra.mxu0 0
  %329 = vmatprep.mubr.bf16.mxu0 0
  %330 = vmatmul.mubr.bf16.gmra.mrb[0].mxu0 %v286
  %v331 = vpop.f32.mrb[0].mxu0
  %v332 = vadd.f32 %v227, %v331
  %v333 = vpop.f32.mrb[0].mxu0
  %v334 = vadd.f32 %v227, %v333
  %v335 = vpop.f32.mrb[0].mxu0
  %v336 = vadd.f32 %v232, %v335
  %v337 = vpop.f32.mrb[0].mxu0
  %v338 = vadd.f32 %v232, %v337
  %339 = vmatprep.mubr.bf16.mxu0 0
  %340 = vmatmul.mubr.bf16.gmra.mrb[0].mxu0 %v289
  %v341 = vpop.f32.mrb[0].mxu0
  %v342 = vadd.f32 %v237, %v341
  %v343 = vpop.f32.mrb[0].mxu0
  %v344 = vadd.f32 %v237, %v343
  %v345 = vpop.f32.mrb[0].mxu0
  %v346 = vadd.f32 %v242, %v345
  %v347 = vpop.f32.mrb[0].mxu0
  %v348 = vadd.f32 %v242, %v347
  %349 = vmatprep.mubr.bf16.mxu0 0
  %350 = vmatmul.mubr.bf16.gmra.mrb[0].mxu0 %v292
  %v351 = vpop.f32.mrb[0].mxu0
  %v352 = vadd.f32 %v247, %v351
  %v353 = vpop.f32.mrb[0].mxu0
  %v354 = vadd.f32 %v247, %v353
  %v355 = vpop.f32.mrb[0].mxu0
  %v356 = vadd.f32 %v252, %v355
  %v357 = vpop.f32.mrb[0].mxu0
  %v358 = vadd.f32 %v252, %v357
  %359 = vmatprep.mubr.bf16.mxu0 0
  %360 = vmatmul.mubr.bf16.gmra.mrb[0].mxu0 %v295
  %v361 = vpop.f32.mrb[0].mxu0
  %v362 = vadd.f32 %v257, %v361
  %v363 = vpop.f32.mrb[0].mxu0
  %v364 = vadd.f32 %v257, %v363
  %v365 = vpop.f32.mrb[0].mxu0
  %v366 = vadd.f32 %v262, %v365
  %v367 = vpop.f32.mrb[0].mxu0
  %v368 = vadd.f32 %v262, %v367
  %369 = vdwg.mxu0
  %v370 = vpack.c.bf16 %v336, %v332
  %v371 = vpack.c.bf16 %v338, %v334
  %v372 = vpack.c.bf16 %v346, %v342
  %v373 = vpack.c.bf16 %v348, %v344
  %v374 = vpack.c.bf16 %v356, %v352
  %v375 = vpack.c.bf16 %v358, %v354
  %v376 = vpack.c.bf16 %v366, %v362
  %v377 = vpack.c.bf16 %v368, %v364
  %378 = vxpose.xlu0.c.b16.start [1/8] %v372, 128
  %379 = vxpose.xlu0.c.b16.cont [2/8] 0, 128
  %380 = vxpose.xlu0.c.b16.cont [3/8] 0, 128
  %381 = vxpose.xlu0.c.b16.cont [4/8] 0, 128
  %382 = vxpose.xlu0.c.b16.cont [5/8] 0, 128
  %383 = vxpose.xlu0.c.b16.cont [6/8] 0, 128
  %384 = vxpose.xlu0.c.b16.cont [7/8] 0, 128
  %385 = vxpose.xlu0.c.b16.end [8/8] 0, 128
  %v386 = vpop.trf.xlu0
  %v387 = vpop.trf.xlu0
  %v388 = vpop.trf.xlu0
  %v389 = vpop.trf.xlu0
  %v390 = vpop.trf.xlu0
  %v391 = vpop.trf.xlu0
  %v392 = vpop.trf.xlu0
  %v393 = vpop.trf.xlu0
  %394 = vxpose.xlu0.c.b16.start [1/8] %v373, 128
  %395 = vxpose.xlu0.c.b16.cont [2/8] 0, 128
  %396 = vxpose.xlu0.c.b16.cont [3/8] 0, 128
  %397 = vxpose.xlu0.c.b16.cont [4/8] 0, 128
  %398 = vxpose.xlu0.c.b16.cont [5/8] 0, 128
  %399 = vxpose.xlu0.c.b16.cont [6/8] 0, 128
  %400 = vxpose.xlu0.c.b16.cont [7/8] 0, 128
  %401 = vxpose.xlu0.c.b16.end [8/8] 0, 128
  %v402 = vpop.trf.xlu0
  %v403 = vpop.trf.xlu0
  %v404 = vpop.trf.xlu0
  %v405 = vpop.trf.xlu0
  %v406 = vpop.trf.xlu0
  %v407 = vpop.trf.xlu0
  %v408 = vpop.trf.xlu0
  %v409 = vpop.trf.xlu0
  %vm410 = vcmask 130048
  %v412 = vsel %vm410, %v386, 0
  %v415 = vsel %vm410, %v387, 0
  %v418 = vsel %vm410, %v388, 0
  %v421 = vsel %vm410, %v389, 0
  %v424 = vsel %vm410, %v390, 0
  %v427 = vsel %vm410, %v391, 0
  %v430 = vsel %vm410, %v392, 0
  %v433 = vsel %vm410, %v393, 0
  %v436 = vsel %vm410, %v402, 0
  %v439 = vsel %vm410, %v403, 0
  %v442 = vsel %vm410, %v404, 0
  %v445 = vsel %vm410, %v405, 0
  %v448 = vsel %vm410, %v406, 0
  %v451 = vsel %vm410, %v407, 0
  %v454 = vsel %vm410, %v408, 0
  %v457 = vsel %vm410, %v409, 0
  %459 = vmatprep.subr.bf16.mxu0 %v371
  %460 = vmatpush1.bf16.msra.mxu0 %v370
  %461 = vmatprep.subr.bf16.mxu0 0
  %462 = vmatpush1.bf16.msra.mxu0 0
  %463 = vmatprep.subr.bf16.mxu0 0
  %464 = vmatpush1.bf16.msra.mxu0 0
  %465 = vmatprep.subr.bf16.mxu0 0
  %466 = vmatpush1.bf16.msra.mxu0 0
  %467 = vmatprep.subr.bf16.mxu0 0
  %468 = vmatpush1.bf16.msra.mxu0 0
  %469 = vmatprep.subr.bf16.mxu0 0
  %470 = vmatpush1.bf16.msra.mxu0 0
  %471 = vmatprep.subr.bf16.mxu0 0
  %472 = vmatpush1.bf16.msra.mxu0 0
  %473 = vmatprep.subr.bf16.mxu0 0
  %474 = vmatpush1.bf16.msra.mxu0 0
  %475 = vmatprep.subr.bf16.mxu0 0
  %476 = vmatpush1.bf16.msra.mxu0 0
  %477 = vmatprep.subr.bf16.mxu0 0
  %478 = vmatpush1.bf16.msra.mxu0 0
  %479 = vmatprep.subr.bf16.mxu0 0
  %480 = vmatpush1.bf16.msra.mxu0 0
  %481 = vmatprep.subr.bf16.mxu0 0
  %482 = vmatpush1.bf16.msra.mxu0 0
  %483 = vmatprep.subr.bf16.mxu0 0
  %484 = vmatpush1.bf16.msra.mxu0 0
  %485 = vmatprep.subr.bf16.mxu0 0
  %486 = vmatpush1.bf16.msra.mxu0 0
  %487 = vmatprep.subr.bf16.mxu0 0
  %488 = vmatpush1.bf16.msra.mxu0 0
  %489 = vmatprep.subr.bf16.mxu0 0
  %490 = vmatpush1.bf16.msra.mxu0 0
  %491 = vmatprep.mubr.bf16.mxu0 0
  %492 = vmatmul.mubr.bf16.gmra.mrb[0].mxu0 %v412
  %v493 = vpop.f32.mrb[0].mxu0
  %v494 = vadd.f32 0.0, %v493
  %v495 = vpop.f32.mrb[0].mxu0
  %v496 = vadd.f32 0.0, %v495
  %v497 = vpop.f32.mrb[0].mxu0
  %v498 = vadd.f32 0.0, %v497
  %v499 = vpop.f32.mrb[0].mxu0
  %v500 = vadd.f32 0.0, %v499
  %501 = vmatprep.mubr.bf16.mxu0 0
  %502 = vmatmul.mubr.bf16.gmra.mrb[0].mxu0 %v415
  %v503 = vpop.f32.mrb[0].mxu0
  %v504 = vadd.f32 0.0, %v503
  %v505 = vpop.f32.mrb[0].mxu0
  %v506 = vadd.f32 0.0, %v505
  %v507 = vpop.f32.mrb[0].mxu0
  %v508 = vadd.f32 0.0, %v507
  %v509 = vpop.f32.mrb[0].mxu0
  %v510 = vadd.f32 0.0, %v509
  %511 = vmatprep.mubr.bf16.mxu0 0
  %512 = vmatmul.mubr.bf16.gmra.mrb[0].mxu0 %v418
  %v513 = vpop.f32.mrb[0].mxu0
  %v514 = vadd.f32 0.0, %v513
  %v515 = vpop.f32.mrb[0].mxu0
  %v516 = vadd.f32 0.0, %v515
  %v517 = vpop.f32.mrb[0].mxu0
  %v518 = vadd.f32 0.0, %v517
  %v519 = vpop.f32.mrb[0].mxu0
  %v520 = vadd.f32 0.0, %v519
  %521 = vmatprep.mubr.bf16.mxu0 0
  %522 = vmatmul.mubr.bf16.gmra.mrb[0].mxu0 %v421
  %v523 = vpop.f32.mrb[0].mxu0
  %v524 = vadd.f32 0.0, %v523
  %v525 = vpop.f32.mrb[0].mxu0
  %v526 = vadd.f32 0.0, %v525
  %v527 = vpop.f32.mrb[0].mxu0
  %v528 = vadd.f32 0.0, %v527
  %v529 = vpop.f32.mrb[0].mxu0
  %v530 = vadd.f32 0.0, %v529
  %531 = vmatprep.mubr.bf16.mxu0 0
  %532 = vmatmul.mubr.bf16.gmra.mrb[0].mxu0 %v424
  %v533 = vpop.f32.mrb[0].mxu0
  %v534 = vadd.f32 0.0, %v533
  %v535 = vpop.f32.mrb[0].mxu0
  %v536 = vadd.f32 0.0, %v535
  %v537 = vpop.f32.mrb[0].mxu0
  %v538 = vadd.f32 0.0, %v537
  %v539 = vpop.f32.mrb[0].mxu0
  %v540 = vadd.f32 0.0, %v539
  %541 = vmatprep.mubr.bf16.mxu0 0
  %542 = vmatmul.mubr.bf16.gmra.mrb[0].mxu0 %v427
  %v543 = vpop.f32.mrb[0].mxu0
  %v544 = vadd.f32 0.0, %v543
  %v545 = vpop.f32.mrb[0].mxu0
  %v546 = vadd.f32 0.0, %v545
  %v547 = vpop.f32.mrb[0].mxu0
  %v548 = vadd.f32 0.0, %v547
  %v549 = vpop.f32.mrb[0].mxu0
  %v550 = vadd.f32 0.0, %v549
  %551 = vmatprep.mubr.bf16.mxu0 0
  %552 = vmatmul.mubr.bf16.gmra.mrb[0].mxu0 %v430
  %v553 = vpop.f32.mrb[0].mxu0
  %v554 = vadd.f32 0.0, %v553
  %v555 = vpop.f32.mrb[0].mxu0
  %v556 = vadd.f32 0.0, %v555
  %v557 = vpop.f32.mrb[0].mxu0
  %v558 = vadd.f32 0.0, %v557
  %v559 = vpop.f32.mrb[0].mxu0
  %v560 = vadd.f32 0.0, %v559
  %561 = vmatprep.mubr.bf16.mxu0 0
  %562 = vmatmul.mubr.bf16.gmra.mrb[0].mxu0 %v433
  %v563 = vpop.f32.mrb[0].mxu0
  %v564 = vadd.f32 0.0, %v563
  %v565 = vpop.f32.mrb[0].mxu0
  %v566 = vadd.f32 0.0, %v565
  %v567 = vpop.f32.mrb[0].mxu0
  %v568 = vadd.f32 0.0, %v567
  %v569 = vpop.f32.mrb[0].mxu0
  %v570 = vadd.f32 0.0, %v569
  %571 = vmatprep.mubr.bf16.mxu0 0
  %572 = vmatmul.mubr.bf16.gmra.mrb[0].mxu0 %v436
  %v573 = vpop.f32.mrb[0].mxu0
  %v574 = vadd.f32 0.0, %v573
  %v575 = vpop.f32.mrb[0].mxu0
  %v576 = vadd.f32 0.0, %v575
  %v577 = vpop.f32.mrb[0].mxu0
  %v578 = vadd.f32 0.0, %v577
  %v579 = vpop.f32.mrb[0].mxu0
  %v580 = vadd.f32 0.0, %v579
  %581 = vmatprep.mubr.bf16.mxu0 0
  %582 = vmatmul.mubr.bf16.gmra.mrb[0].mxu0 %v439
  %v583 = vpop.f32.mrb[0].mxu0
  %v584 = vadd.f32 0.0, %v583
  %v585 = vpop.f32.mrb[0].mxu0
  %v586 = vadd.f32 0.0, %v585
  %v587 = vpop.f32.mrb[0].mxu0
  %v588 = vadd.f32 0.0, %v587
  %v589 = vpop.f32.mrb[0].mxu0
  %v590 = vadd.f32 0.0, %v589
  %591 = vmatprep.mubr.bf16.mxu0 0
  %592 = vmatmul.mubr.bf16.gmra.mrb[0].mxu0 %v442
  %v593 = vpop.f32.mrb[0].mxu0
  %v594 = vadd.f32 0.0, %v593
  %v595 = vpop.f32.mrb[0].mxu0
  %v596 = vadd.f32 0.0, %v595
  %v597 = vpop.f32.mrb[0].mxu0
  %v598 = vadd.f32 0.0, %v597
  %v599 = vpop.f32.mrb[0].mxu0
  %v600 = vadd.f32 0.0, %v599
  %601 = vmatprep.mubr.bf16.mxu0 0
  %602 = vmatmul.mubr.bf16.gmra.mrb[0].mxu0 %v445
  %v603 = vpop.f32.mrb[0].mxu0
  %v604 = vadd.f32 0.0, %v603
  %v605 = vpop.f32.mrb[0].mxu0
  %v606 = vadd.f32 0.0, %v605
  %v607 = vpop.f32.mrb[0].mxu0
  %v608 = vadd.f32 0.0, %v607
  %v609 = vpop.f32.mrb[0].mxu0
  %v610 = vadd.f32 0.0, %v609
  %611 = vmatprep.mubr.bf16.mxu0 0
  %612 = vmatmul.mubr.bf16.gmra.mrb[0].mxu0 %v448
  %v613 = vpop.f32.mrb[0].mxu0
  %v614 = vadd.f32 0.0, %v613
  %v615 = vpop.f32.mrb[0].mxu0
  %v616 = vadd.f32 0.0, %v615
  %v617 = vpop.f32.mrb[0].mxu0
  %v618 = vadd.f32 0.0, %v617
  %v619 = vpop.f32.mrb[0].mxu0
  %v620 = vadd.f32 0.0, %v619
  %621 = vmatprep.mubr.bf16.mxu0 0
  %622 = vmatmul.mubr.bf16.gmra.mrb[0].mxu0 %v451
  %v623 = vpop.f32.mrb[0].mxu0
  %v624 = vadd.f32 0.0, %v623
  %v625 = vpop.f32.mrb[0].mxu0
  %v626 = vadd.f32 0.0, %v625
  %v627 = vpop.f32.mrb[0].mxu0
  %v628 = vadd.f32 0.0, %v627
  %v629 = vpop.f32.mrb[0].mxu0
  %v630 = vadd.f32 0.0, %v629
  %631 = vmatprep.mubr.bf16.mxu0 0
  %632 = vmatmul.mubr.bf16.gmra.mrb[0].mxu0 %v454
  %v633 = vpop.f32.mrb[0].mxu0
  %v634 = vadd.f32 0.0, %v633
  %v635 = vpop.f32.mrb[0].mxu0
  %v636 = vadd.f32 0.0, %v635
  %v637 = vpop.f32.mrb[0].mxu0
  %v638 = vadd.f32 0.0, %v637
  %v639 = vpop.f32.mrb[0].mxu0
  %v640 = vadd.f32 0.0, %v639
  %641 = vmatprep.mubr.bf16.mxu0 0
  %642 = vmatmul.mubr.bf16.gmra.mrb[0].mxu0 %v457
  %v643 = vpop.f32.mrb[0].mxu0
  %v644 = vadd.f32 0.0, %v643
  %v645 = vpop.f32.mrb[0].mxu0
  %v646 = vadd.f32 0.0, %v645
  %v647 = vpop.f32.mrb[0].mxu0
  %v648 = vadd.f32 0.0, %v647
  %v649 = vpop.f32.mrb[0].mxu0
  %v650 = vadd.f32 0.0, %v649
  %651 = vdwg.mxu0
  %v652 = vmax.f32 %v494, %v504
  %v653 = vmax.f32 %v498, %v508
  %v654 = vmax.f32 %v652, %v514
  %v655 = vmax.f32 %v653, %v518
  %v656 = vmax.f32 %v654, %v524
  %v657 = vmax.f32 %v655, %v528
  %v658 = vmax.f32 %v656, %v534
  %v659 = vmax.f32 %v657, %v538
  %v660 = vmax.f32 %v658, %v544
  %v661 = vmax.f32 %v659, %v548
  %v662 = vmax.f32 %v660, %v554
  %v663 = vmax.f32 %v661, %v558
  %v664 = vmax.f32 %v662, %v564
  %v665 = vmax.f32 %v663, %v568
  %v666 = vmax.f32 %v664, %v574
  %v667 = vmax.f32 %v665, %v578
  %v668 = vmax.f32 %v666, %v584
  %v669 = vmax.f32 %v667, %v588
  %v670 = vmax.f32 %v668, %v594
  %v671 = vmax.f32 %v669, %v598
  %v672 = vmax.f32 %v670, %v604
  %v673 = vmax.f32 %v671, %v608
  %v674 = vmax.f32 %v672, %v614
  %v675 = vmax.f32 %v673, %v618
  %v676 = vmax.f32 %v674, %v624
  %v677 = vmax.f32 %v675, %v628
  %v678 = vmax.f32 %v676, %v634
  %v679 = vmax.f32 %v677, %v638
  %v680 = vmax.f32 %v678, %v644
  %v681 = vmax.f32 %v679, %v648
  %v682 = vmax.f32 %v680, %v681
  %v683 = vrot.slane %v682, 4
  %v684 = vmax.f32 %v682, %v683
  %v685 = vrot.slane %v684, 2
  %v686 = vmax.f32 %v684, %v685
  %v687 = vrot.slane %v686, 1
  %v688 = vmax.f32 %v686, %v687
  %v689 = vmax.f32 %v496, %v506
  %v690 = vmax.f32 %v500, %v510
  %v691 = vmax.f32 %v689, %v516
  %v692 = vmax.f32 %v690, %v520
  %v693 = vmax.f32 %v691, %v526
  %v694 = vmax.f32 %v692, %v530
  %v695 = vmax.f32 %v693, %v536
  %v696 = vmax.f32 %v694, %v540
  %v697 = vmax.f32 %v695, %v546
  %v698 = vmax.f32 %v696, %v550
  %v699 = vmax.f32 %v697, %v556
  %v700 = vmax.f32 %v698, %v560
  %v701 = vmax.f32 %v699, %v566
  %v702 = vmax.f32 %v700, %v570
  %v703 = vmax.f32 %v701, %v576
  %v704 = vmax.f32 %v702, %v580
  %v705 = vmax.f32 %v703, %v586
  %v706 = vmax.f32 %v704, %v590
  %v707 = vmax.f32 %v705, %v596
  %v708 = vmax.f32 %v706, %v600
  %v709 = vmax.f32 %v707, %v606
  %v710 = vmax.f32 %v708, %v610
  %v711 = vmax.f32 %v709, %v616
  %v712 = vmax.f32 %v710, %v620
  %v713 = vmax.f32 %v711, %v626
  %v714 = vmax.f32 %v712, %v630
  %v715 = vmax.f32 %v713, %v636
  %v716 = vmax.f32 %v714, %v640
  %v717 = vmax.f32 %v715, %v646
  %v718 = vmax.f32 %v716, %v650
  %v719 = vmax.f32 %v717, %v718
  %v720 = vrot.slane %v719, 4
  %v721 = vmax.f32 %v719, %v720
  %v722 = vrot.slane %v721, 2
  %v723 = vmax.f32 %v721, %v722
  %v724 = vrot.slane %v723, 1
  %v725 = vmax.f32 %v723, %v724
  %v726 = vsub.f32 %v494, %v688
  %v727 = vsub.f32 %v496, %v725
  %v728 = vsub.f32 %v498, %v688
  %v729 = vsub.f32 %v500, %v725
  %v730 = vsub.f32 %v504, %v688
  %v731 = vsub.f32 %v506, %v725
  %v732 = vsub.f32 %v508, %v688
  %v733 = vsub.f32 %v510, %v725
  %v734 = vsub.f32 %v514, %v688
  %v735 = vsub.f32 %v516, %v725
  %v736 = vsub.f32 %v518, %v688
  %v737 = vsub.f32 %v520, %v725
  %v738 = vsub.f32 %v524, %v688
  %v739 = vsub.f32 %v526, %v725
  %v740 = vsub.f32 %v528, %v688
  %v741 = vsub.f32 %v530, %v725
  %v742 = vsub.f32 %v534, %v688
  %v743 = vsub.f32 %v536, %v725
  %v744 = vsub.f32 %v538, %v688
  %v745 = vsub.f32 %v540, %v725
  %v746 = vsub.f32 %v544, %v688
  %v747 = vsub.f32 %v546, %v725
  %v748 = vsub.f32 %v548, %v688
  %v749 = vsub.f32 %v550, %v725
  %v750 = vsub.f32 %v554, %v688
  %v751 = vsub.f32 %v556, %v725
  %v752 = vsub.f32 %v558, %v688
  %v753 = vsub.f32 %v560, %v725
  %v754 = vsub.f32 %v564, %v688
  %v755 = vsub.f32 %v566, %v725
  %v756 = vsub.f32 %v568, %v688
  %v757 = vsub.f32 %v570, %v725
  %v758 = vsub.f32 %v574, %v688
  %v759 = vsub.f32 %v576, %v725
  %v760 = vsub.f32 %v578, %v688
  %v761 = vsub.f32 %v580, %v725
  %v762 = vsub.f32 %v584, %v688
  %v763 = vsub.f32 %v586, %v725
  %v764 = vsub.f32 %v588, %v688
  %v765 = vsub.f32 %v590, %v725
  %v766 = vsub.f32 %v594, %v688
  %v767 = vsub.f32 %v596, %v725
  %v768 = vsub.f32 %v598, %v688
  %v769 = vsub.f32 %v600, %v725
  %v770 = vsub.f32 %v604, %v688
  %v771 = vsub.f32 %v606, %v725
  %v772 = vsub.f32 %v608, %v688
  %v773 = vsub.f32 %v610, %v725
  %v774 = vsub.f32 %v614, %v688
  %v775 = vsub.f32 %v616, %v725
  %v776 = vsub.f32 %v618, %v688
  %v777 = vsub.f32 %v620, %v725
  %v778 = vsub.f32 %v624, %v688
  %v779 = vsub.f32 %v626, %v725
  %v780 = vsub.f32 %v628, %v688
  %v781 = vsub.f32 %v630, %v725
  %v782 = vsub.f32 %v634, %v688
  %v783 = vsub.f32 %v636, %v725
  %v784 = vsub.f32 %v638, %v688
  %v785 = vsub.f32 %v640, %v725
  %v786 = vsub.f32 %v644, %v688
  %v787 = vsub.f32 %v646, %v725
  %v788 = vsub.f32 %v648, %v688
  %v789 = vsub.f32 %v650, %v725
  %v790 = vmul.f32 %v726, 1.442695
  %v791 = vpow.pop %v790
  %v792 = vmul.f32 %v727, 1.442695
  %v793 = vpow.pop %v792
  %v794 = vmul.f32 %v728, 1.442695
  %v795 = vpow.pop %v794
  %v796 = vmul.f32 %v729, 1.442695
  %v797 = vpow.pop %v796
  %v798 = vmul.f32 %v730, 1.442695
  %v799 = vpow.pop %v798
  %v800 = vmul.f32 %v731, 1.442695
  %v801 = vpow.pop %v800
  %v802 = vmul.f32 %v732, 1.442695
  %v803 = vpow.pop %v802
  %v804 = vmul.f32 %v733, 1.442695
  %v805 = vpow.pop %v804
  %v806 = vmul.f32 %v734, 1.442695
  %v807 = vpow.pop %v806
  %v808 = vmul.f32 %v735, 1.442695
  %v809 = vpow.pop %v808
  %v810 = vmul.f32 %v736, 1.442695
  %v811 = vpow.pop %v810
  %v812 = vmul.f32 %v737, 1.442695
  %v813 = vpow.pop %v812
  %v814 = vmul.f32 %v738, 1.442695
  %v815 = vpow.pop %v814
  %v816 = vmul.f32 %v739, 1.442695
  %v817 = vpow.pop %v816
  %v818 = vmul.f32 %v740, 1.442695
  %v819 = vpow.pop %v818
  %v820 = vmul.f32 %v741, 1.442695
  %v821 = vpow.pop %v820
  %v822 = vmul.f32 %v742, 1.442695
  %v823 = vpow.pop %v822
  %v824 = vmul.f32 %v743, 1.442695
  %v825 = vpow.pop %v824
  %v826 = vmul.f32 %v744, 1.442695
  %v827 = vpow.pop %v826
  %v828 = vmul.f32 %v745, 1.442695
  %v829 = vpow.pop %v828
  %v830 = vmul.f32 %v746, 1.442695
  %v831 = vpow.pop %v830
  %v832 = vmul.f32 %v747, 1.442695
  %v833 = vpow.pop %v832
  %v834 = vmul.f32 %v748, 1.442695
  %v835 = vpow.pop %v834
  %v836 = vmul.f32 %v749, 1.442695
  %v837 = vpow.pop %v836
  %v838 = vmul.f32 %v750, 1.442695
  %v839 = vpow.pop %v838
  %v840 = vmul.f32 %v751, 1.442695
  %v841 = vpow.pop %v840
  %v842 = vmul.f32 %v752, 1.442695
  %v843 = vpow.pop %v842
  %v844 = vmul.f32 %v753, 1.442695
  %v845 = vpow.pop %v844
  %v846 = vmul.f32 %v754, 1.442695
  %v847 = vpow.pop %v846
  %v848 = vmul.f32 %v755, 1.442695
  %v849 = vpow.pop %v848
  %v850 = vmul.f32 %v756, 1.442695
  %v851 = vpow.pop %v850
  %v852 = vmul.f32 %v757, 1.442695
  %v853 = vpow.pop %v852
  %v854 = vmul.f32 %v758, 1.442695
  %v855 = vpow.pop %v854
  %v856 = vmul.f32 %v759, 1.442695
  %v857 = vpow.pop %v856
  %v858 = vmul.f32 %v760, 1.442695
  %v859 = vpow.pop %v858
  %v860 = vmul.f32 %v761, 1.442695
  %v861 = vpow.pop %v860
  %v862 = vmul.f32 %v762, 1.442695
  %v863 = vpow.pop %v862
  %v864 = vmul.f32 %v763, 1.442695
  %v865 = vpow.pop %v864
  %v866 = vmul.f32 %v764, 1.442695
  %v867 = vpow.pop %v866
  %v868 = vmul.f32 %v765, 1.442695
  %v869 = vpow.pop %v868
  %v870 = vmul.f32 %v766, 1.442695
  %v871 = vpow.pop %v870
  %v872 = vmul.f32 %v767, 1.442695
  %v873 = vpow.pop %v872
  %v874 = vmul.f32 %v768, 1.442695
  %v875 = vpow.pop %v874
  %v876 = vmul.f32 %v769, 1.442695
  %v877 = vpow.pop %v876
  %v878 = vmul.f32 %v770, 1.442695
  %v879 = vpow.pop %v878
  %v880 = vmul.f32 %v771, 1.442695
  %v881 = vpow.pop %v880
  %v882 = vmul.f32 %v772, 1.442695
  %v883 = vpow.pop %v882
  %v884 = vmul.f32 %v773, 1.442695
  %v885 = vpow.pop %v884
  %v886 = vmul.f32 %v774, 1.442695
  %v887 = vpow.pop %v886
  %v888 = vmul.f32 %v775, 1.442695
  %v889 = vpow.pop %v888
  %v890 = vmul.f32 %v776, 1.442695
  %v891 = vpow.pop %v890
  %v892 = vmul.f32 %v777, 1.442695
  %v893 = vpow.pop %v892
  %v894 = vmul.f32 %v778, 1.442695
  %v895 = vpow.pop %v894
  %v896 = vmul.f32 %v779, 1.442695
  %v897 = vpow.pop %v896
  %v898 = vmul.f32 %v780, 1.442695
  %v899 = vpow.pop %v898
  %v900 = vmul.f32 %v781, 1.442695
  %v901 = vpow.pop %v900
  %v902 = vmul.f32 %v782, 1.442695
  %v903 = vpow.pop %v902
  %v904 = vmul.f32 %v783, 1.442695
  %v905 = vpow.pop %v904
  %v906 = vmul.f32 %v784, 1.442695
  %v907 = vpow.pop %v906
  %v908 = vmul.f32 %v785, 1.442695
  %v909 = vpow.pop %v908
  %v910 = vmul.f32 %v786, 1.442695
  %v911 = vpow.pop %v910
  %v912 = vmul.f32 %v787, 1.442695
  %v913 = vpow.pop %v912
  %v914 = vmul.f32 %v788, 1.442695
  %v915 = vpow.pop %v914
  %v916 = vmul.f32 %v789, 1.442695
  %v917 = vpow.pop %v916
  %v918 = vadd.f32 %v791, %v795
  %v919 = vadd.f32 %v918, %v799
  %v920 = vadd.f32 %v919, %v803
  %v921 = vadd.f32 %v920, %v807
  %v922 = vadd.f32 %v921, %v811
  %v923 = vadd.f32 %v922, %v815
  %v924 = vadd.f32 %v923, %v819
  %v925 = vadd.f32 %v924, %v823
  %v926 = vadd.f32 %v925, %v827
  %v927 = vadd.f32 %v926, %v831
  %v928 = vadd.f32 %v927, %v835
  %v929 = vadd.f32 %v928, %v839
  %v930 = vadd.f32 %v929, %v843
  %v931 = vadd.f32 %v930, %v847
  %v932 = vadd.f32 %v931, %v851
  %v933 = vadd.f32 %v932, %v855
  %v934 = vadd.f32 %v933, %v859
  %v935 = vadd.f32 %v934, %v863
  %v936 = vadd.f32 %v935, %v867
  %v937 = vadd.f32 %v936, %v871
  %v938 = vadd.f32 %v937, %v875
  %v939 = vadd.f32 %v938, %v879
  %v940 = vadd.f32 %v939, %v883
  %v941 = vadd.f32 %v940, %v887
  %v942 = vadd.f32 %v941, %v891
  %v943 = vadd.f32 %v942, %v895
  %v944 = vadd.f32 %v943, %v899
  %v945 = vadd.f32 %v944, %v903
  %v946 = vadd.f32 %v945, %v907
  %v947 = vadd.f32 %v946, %v911
  %v948 = vadd.f32 %v947, %v915
  %v949 = vrot.slane %v948, 4
  %v950 = vadd.f32 %v948, %v949
  %v951 = vrot.slane %v950, 2
  %v952 = vadd.f32 %v950, %v951
  %v953 = vrot.slane %v952, 1
  %v954 = vadd.f32 %v952, %v953
  %v955 = vadd.f32 %v793, %v797
  %v956 = vadd.f32 %v955, %v801
  %v957 = vadd.f32 %v956, %v805
  %v958 = vadd.f32 %v957, %v809
  %v959 = vadd.f32 %v958, %v813
  %v960 = vadd.f32 %v959, %v817
  %v961 = vadd.f32 %v960, %v821
  %v962 = vadd.f32 %v961, %v825
  %v963 = vadd.f32 %v962, %v829
  %v964 = vadd.f32 %v963, %v833
  %v965 = vadd.f32 %v964, %v837
  %v966 = vadd.f32 %v965, %v841
  %v967 = vadd.f32 %v966, %v845
  %v968 = vadd.f32 %v967, %v849
  %v969 = vadd.f32 %v968, %v853
  %v970 = vadd.f32 %v969, %v857
  %v971 = vadd.f32 %v970, %v861
  %v972 = vadd.f32 %v971, %v865
  %v973 = vadd.f32 %v972, %v869
  %v974 = vadd.f32 %v973, %v873
  %v975 = vadd.f32 %v974, %v877
  %v976 = vadd.f32 %v975, %v881
  %v977 = vadd.f32 %v976, %v885
  %v978 = vadd.f32 %v977, %v889
  %v979 = vadd.f32 %v978, %v893
  %v980 = vadd.f32 %v979, %v897
  %v981 = vadd.f32 %v980, %v901
  %v982 = vadd.f32 %v981, %v905
  %v983 = vadd.f32 %v982, %v909
  %v984 = vadd.f32 %v983, %v913
  %v985 = vadd.f32 %v984, %v917
  %v986 = vrot.slane %v985, 4
  %v987 = vadd.f32 %v985, %v986
  %v988 = vrot.slane %v987, 2
  %v989 = vadd.f32 %v987, %v988
  %v990 = vrot.slane %v989, 1
  %v991 = vadd.f32 %v989, %v990
  %v992 = vpack.c.bf16 %v795, %v791
  %v993 = vpack.c.bf16 %v797, %v793
  %v994 = vpack.c.bf16 %v803, %v799
  %v995 = vpack.c.bf16 %v805, %v801
  %v996 = vpack.c.bf16 %v811, %v807
  %v997 = vpack.c.bf16 %v813, %v809
  %v998 = vpack.c.bf16 %v819, %v815
  %v999 = vpack.c.bf16 %v821, %v817
  %v1000 = vpack.c.bf16 %v827, %v823
  %v1001 = vpack.c.bf16 %v829, %v825
  %v1002 = vpack.c.bf16 %v835, %v831
  %v1003 = vpack.c.bf16 %v837, %v833
  %v1004 = vpack.c.bf16 %v843, %v839
  %v1005 = vpack.c.bf16 %v845, %v841
  %v1006 = vpack.c.bf16 %v851, %v847
  %v1007 = vpack.c.bf16 %v853, %v849
  %v1008 = vpack.c.bf16 %v859, %v855
  %v1009 = vpack.c.bf16 %v861, %v857
  %v1010 = vpack.c.bf16 %v867, %v863
  %v1011 = vpack.c.bf16 %v869, %v865
  %v1012 = vpack.c.bf16 %v875, %v871
  %v1013 = vpack.c.bf16 %v877, %v873
  %v1014 = vpack.c.bf16 %v883, %v879
  %v1015 = vpack.c.bf16 %v885, %v881
  %v1016 = vpack.c.bf16 %v891, %v887
  %v1017 = vpack.c.bf16 %v893, %v889
  %v1018 = vpack.c.bf16 %v899, %v895
  %v1019 = vpack.c.bf16 %v901, %v897
  %v1020 = vpack.c.bf16 %v907, %v903
  %v1021 = vpack.c.bf16 %v909, %v905
  %v1022 = vpack.c.bf16 %v915, %v911
  %v1023 = vpack.c.bf16 %v917, %v913
  %1024 = vmatprep.subr.bf16.mxu0 %v993
  %1025 = vmatpush1.bf16.msra.mxu0 %v992
  %1026 = vmatprep.subr.bf16.mxu0 %v995
  %1027 = vmatpush1.bf16.msra.mxu0 %v994
  %1028 = vmatprep.subr.bf16.mxu0 %v997
  %1029 = vmatpush1.bf16.msra.mxu0 %v996
  %1030 = vmatprep.subr.bf16.mxu0 %v999
  %1031 = vmatpush1.bf16.msra.mxu0 %v998
  %1032 = vmatprep.subr.bf16.mxu0 %v1001
  %1033 = vmatpush1.bf16.msra.mxu0 %v1000
  %1034 = vmatprep.subr.bf16.mxu0 %v1003
  %1035 = vmatpush1.bf16.msra.mxu0 %v1002
  %1036 = vmatprep.subr.bf16.mxu0 %v1005
  %1037 = vmatpush1.bf16.msra.mxu0 %v1004
  %1038 = vmatprep.subr.bf16.mxu0 %v1007
  %1039 = vmatpush1.bf16.msra.mxu0 %v1006
  %1040 = vmatprep.subr.bf16.mxu0 %v1009
  %1041 = vmatpush1.bf16.msra.mxu0 %v1008
  %1042 = vmatprep.subr.bf16.mxu0 %v1011
  %1043 = vmatpush1.bf16.msra.mxu0 %v1010
  %1044 = vmatprep.subr.bf16.mxu0 %v1013
  %1045 = vmatpush1.bf16.msra.mxu0 %v1012
  %1046 = vmatprep.subr.bf16.mxu0 %v1015
  %1047 = vmatpush1.bf16.msra.mxu0 %v1014
  %1048 = vmatprep.subr.bf16.mxu0 %v1017
  %1049 = vmatpush1.bf16.msra.mxu0 %v1016
  %1050 = vmatprep.subr.bf16.mxu0 %v1019
  %1051 = vmatpush1.bf16.msra.mxu0 %v1018
  %1052 = vmatprep.subr.bf16.mxu0 %v1021
  %1053 = vmatpush1.bf16.msra.mxu0 %v1020
  %1054 = vmatprep.subr.bf16.mxu0 %v1023
  %1055 = vmatpush1.bf16.msra.mxu0 %v1022
  %1056 = vmatprep.mubr.bf16.mxu0 %v375
  %1057 = vmatmul.mubr.bf16.gmra.mrb[0].mxu0 %v374
  %v1058 = vpop.f32.mrb[0].mxu0
  %v1059 = vadd.f32 0.0, %v1058
  %v1060 = vpop.f32.mrb[0].mxu0
  %v1061 = vadd.f32 0.0, %v1060
  %v1062 = vpop.f32.mrb[0].mxu0
  %v1063 = vadd.f32 0.0, %v1062
  %v1064 = vpop.f32.mrb[0].mxu0
  %v1065 = vadd.f32 0.0, %v1064
  %1066 = vmatprep.mubr.bf16.mxu0 %v377
  %1067 = vmatmul.mubr.bf16.gmra.mrb[0].mxu0 %v376
  %v1068 = vpop.f32.mrb[0].mxu0
  %v1069 = vadd.f32 0.0, %v1068
  %v1070 = vpop.f32.mrb[0].mxu0
  %v1071 = vadd.f32 0.0, %v1070
  %v1072 = vpop.f32.mrb[0].mxu0
  %v1073 = vadd.f32 0.0, %v1072
  %v1074 = vpop.f32.mrb[0].mxu0
  %v1075 = vadd.f32 0.0, %v1074
  %1076 = vdwg.mxu0
  %v1077 = vrcp.pop %v954
  %v1078 = vrcp.pop %v991
  %v1079 = vmul.f32 %v1059, %v1077
  %v1080 = vmul.f32 %v1061, %v1078
  %v1081 = vmul.f32 %v1063, %v1077
  %v1082 = vmul.f32 %v1065, %v1078
  %v1083 = vmul.f32 %v1069, %v1077
  %v1084 = vmul.f32 %v1071, %v1078
  %v1085 = vmul.f32 %v1073, %v1077
  %v1086 = vmul.f32 %v1075, %v1078
  %v1087 = vmax.f32 %v1079, 0.0
  %v1088 = vmax.f32 %v1080, 0.0
  %v1089 = vmax.f32 %v1081, 0.0
  %v1090 = vmax.f32 %v1082, 0.0
  %v1091 = vmax.f32 %v1083, 0.0
  %v1092 = vmax.f32 %v1084, 0.0
  %v1093 = vmax.f32 %v1085, 0.0
  %v1094 = vmax.f32 %v1086, 0.0
  %v1095 = vpack.c.bf16 %v1089, %v1087
  %v1096 = vpack.c.bf16 %v1090, %v1088
  %v1097 = vpack.c.bf16 %v1093, %v1091
  %v1098 = vpack.c.bf16 %v1094, %v1092
  %v1099 = vmax.f32 %v86, 0.0
  %v1100 = vmax.f32 %v87, 0.0
  %v1101 = vmax.f32 %v88, 0.0
  %v1102 = vmax.f32 %v89, 0.0
  %v1103 = vmax.f32 %v90, 0.0
  %v1104 = vmax.f32 %v91, 0.0
  %v1105 = vmax.f32 %v92, 0.0
  %v1106 = vmax.f32 %v93, 0.0
  %v1107 = vpack.c.bf16 %v1101, %v1099
  %v1108 = vpack.c.bf16 %v1102, %v1100
  %v1109 = vpack.c.bf16 %v1105, %v1103
  %v1110 = vpack.c.bf16 %v1106, %v1104
  %v1119 = vunpack.c.l.b16 %v62
  %v1120 = vunpack.c.l.b16 %v63
  %v1121 = vunpack.c.l.b16 %v64
  %v1122 = vunpack.c.l.b16 %v65
  %v1123 = vunpack.c.l.b16 %v66
  %v1124 = vunpack.c.l.b16 %v67
  %v1125 = vunpack.c.l.b16 %v68
  %v1126 = vunpack.c.l.b16 %v69
  %v1127 = vpack.c.b16 %v1120, %v1119
  %v1128 = vpack.c.b16 %v1122, %v1121
  %v1129 = vpack.c.b16 %v1124, %v1123
  %v1130 = vpack.c.b16 %v1126, %v1125
  %v1132 = vsel %vm284, %v1127, 0
  %v1135 = vsel %vm284, %v1128, 0
  %v1138 = vsel %vm284, %v1129, 0
  %v1141 = vsel %vm284, %v1130, 0
  %1143 = vmatprep.subr.bf16.mxu0 %v1108
  %1144 = vmatpush1.bf16.msra.mxu0 %v1107
  %1145 = vmatprep.subr.bf16.mxu0 %v1110
  %1146 = vmatpush1.bf16.msra.mxu0 %v1109
  %1147 = vmatprep.subr.bf16.mxu0 0
  %1148 = vmatpush1.bf16.msra.mxu0 0
  %1149 = vmatprep.subr.bf16.mxu0 0
  %1150 = vmatpush1.bf16.msra.mxu0 0
  %1151 = vmatprep.subr.bf16.mxu0 0
  %1152 = vmatpush1.bf16.msra.mxu0 0
  %1153 = vmatprep.subr.bf16.mxu0 0
  %1154 = vmatpush1.bf16.msra.mxu0 0
  %1155 = vmatprep.subr.bf16.mxu0 0
  %1156 = vmatpush1.bf16.msra.mxu0 0
  %1157 = vmatprep.subr.bf16.mxu0 0
  %1158 = vmatpush1.bf16.msra.mxu0 0
  %1159 = vmatprep.subr.bf16.mxu0 0
  %1160 = vmatpush1.bf16.msra.mxu0 0
  %1161 = vmatprep.subr.bf16.mxu0 0
  %1162 = vmatpush1.bf16.msra.mxu0 0
  %1163 = vmatprep.subr.bf16.mxu0 0
  %1164 = vmatpush1.bf16.msra.mxu0 0
  %1165 = vmatprep.subr.bf16.mxu0 0
  %1166 = vmatpush1.bf16.msra.mxu0 0
  %1167 = vmatprep.subr.bf16.mxu0 0
  %1168 = vmatpush1.bf16.msra.mxu0 0
  %1169 = vmatprep.subr.bf16.mxu0 0
  %1170 = vmatpush1.bf16.msra.mxu0 0
  %1171 = vmatprep.subr.bf16.mxu0 0
  %1172 = vmatpush1.bf16.msra.mxu0 0
  %1173 = vmatprep.subr.bf16.mxu0 0
  %1174 = vmatpush1.bf16.msra.mxu0 0
  %1175 = vmatprep.mubr.bf16.mxu0 0
  %1176 = vmatmul.mubr.bf16.gmra.mrb[0].mxu0 %v1132
  %v1177 = vpop.f32.mrb[0].mxu0
  %v1178 = vadd.f32 0.0, %v1177
  %v1179 = vpop.f32.mrb[0].mxu0
  %v1180 = vadd.f32 0.0, %v1179
  %v1181 = vpop.f32.mrb[0].mxu0
  %v1182 = vadd.f32 0.0, %v1181
  %v1183 = vpop.f32.mrb[0].mxu0
  %v1184 = vadd.f32 0.0, %v1183
  %1185 = vmatprep.mubr.bf16.mxu0 0
  %1186 = vmatmul.mubr.bf16.gmra.mrb[0].mxu0 %v1135
  %v1187 = vpop.f32.mrb[0].mxu0
  %v1188 = vadd.f32 0.0, %v1187
  %v1189 = vpop.f32.mrb[0].mxu0
  %v1190 = vadd.f32 0.0, %v1189
  %v1191 = vpop.f32.mrb[0].mxu0
  %v1192 = vadd.f32 0.0, %v1191
  %v1193 = vpop.f32.mrb[0].mxu0
  %v1194 = vadd.f32 0.0, %v1193
  %1195 = vmatprep.mubr.bf16.mxu0 0
  %1196 = vmatmul.mubr.bf16.gmra.mrb[0].mxu0 %v1138
  %v1197 = vpop.f32.mrb[0].mxu0
  %v1198 = vadd.f32 0.0, %v1197
  %v1199 = vpop.f32.mrb[0].mxu0
  %v1200 = vadd.f32 0.0, %v1199
  %v1201 = vpop.f32.mrb[0].mxu0
  %v1202 = vadd.f32 0.0, %v1201
  %v1203 = vpop.f32.mrb[0].mxu0
  %v1204 = vadd.f32 0.0, %v1203
  %1205 = vmatprep.mubr.bf16.mxu0 0
  %1206 = vmatmul.mubr.bf16.gmra.mrb[0].mxu0 %v1141
  %v1207 = vpop.f32.mrb[0].mxu0
  %v1208 = vadd.f32 0.0, %v1207
  %v1209 = vpop.f32.mrb[0].mxu0
  %v1210 = vadd.f32 0.0, %v1209
  %v1211 = vpop.f32.mrb[0].mxu0
  %v1212 = vadd.f32 0.0, %v1211
  %v1213 = vpop.f32.mrb[0].mxu0
  %v1214 = vadd.f32 0.0, %v1213
  %1215 = vdwg.mxu0
  %v1224 = vunpack.c.l.b16 %v54
  %v1225 = vunpack.c.l.b16 %v55
  %v1226 = vunpack.c.l.b16 %v56
  %v1227 = vunpack.c.l.b16 %v57
  %v1228 = vunpack.c.l.b16 %v58
  %v1229 = vunpack.c.l.b16 %v59
  %v1230 = vunpack.c.l.b16 %v60
  %v1231 = vunpack.c.l.b16 %v61
  %v1232 = vpack.c.b16 %v1225, %v1224
  %v1233 = vpack.c.b16 %v1227, %v1226
  %v1234 = vpack.c.b16 %v1229, %v1228
  %v1235 = vpack.c.b16 %v1231, %v1230
  %v1237 = vsel %vm284, %v1232, 0
  %v1240 = vsel %vm284, %v1233, 0
  %v1243 = vsel %vm284, %v1234, 0
  %v1246 = vsel %vm284, %v1235, 0
  %1248 = vmatprep.subr.bf16.mxu0 %v1096
  %1249 = vmatpush1.bf16.msra.mxu0 %v1095
  %1250 = vmatprep.subr.bf16.mxu0 %v1098
  %1251 = vmatpush1.bf16.msra.mxu0 %v1097
  %1252 = vmatprep.subr.bf16.mxu0 0
  %1253 = vmatpush1.bf16.msra.mxu0 0
  %1254 = vmatprep.subr.bf16.mxu0 0
  %1255 = vmatpush1.bf16.msra.mxu0 0
  %1256 = vmatprep.subr.bf16.mxu0 0
  %1257 = vmatpush1.bf16.msra.mxu0 0
  %1258 = vmatprep.subr.bf16.mxu0 0
  %1259 = vmatpush1.bf16.msra.mxu0 0
  %1260 = vmatprep.subr.bf16.mxu0 0
  %1261 = vmatpush1.bf16.msra.mxu0 0
  %1262 = vmatprep.subr.bf16.mxu0 0
  %1263 = vmatpush1.bf16.msra.mxu0 0
  %1264 = vmatprep.subr.bf16.mxu0 0
  %1265 = vmatpush1.bf16.msra.mxu0 0
  %1266 = vmatprep.subr.bf16.mxu0 0
  %1267 = vmatpush1.bf16.msra.mxu0 0
  %1268 = vmatprep.subr.bf16.mxu0 0
  %1269 = vmatpush1.bf16.msra.mxu0 0
  %1270 = vmatprep.subr.bf16.mxu0 0
  %1271 = vmatpush1.bf16.msra.mxu0 0
  %1272 = vmatprep.subr.bf16.mxu0 0
  %1273 = vmatpush1.bf16.msra.mxu0 0
  %1274 = vmatprep.subr.bf16.mxu0 0
  %1275 = vmatpush1.bf16.msra.mxu0 0
  %1276 = vmatprep.subr.bf16.mxu0 0
  %1277 = vmatpush1.bf16.msra.mxu0 0
  %1278 = vmatprep.subr.bf16.mxu0 0
  %1279 = vmatpush1.bf16.msra.mxu0 0
  %1280 = vmatprep.mubr.bf16.mxu0 0
  %1281 = vmatmul.mubr.bf16.gmra.mrb[0].mxu0 %v1237
  %v1282 = vpop.f32.mrb[0].mxu0
  %v1283 = vadd.f32 %v1178, %v1282
  %v1284 = vpop.f32.mrb[0].mxu0
  %v1285 = vadd.f32 %v1180, %v1284
  %v1286 = vpop.f32.mrb[0].mxu0
  %v1287 = vadd.f32 %v1182, %v1286
  %v1288 = vpop.f32.mrb[0].mxu0
  %v1289 = vadd.f32 %v1184, %v1288
  %1290 = vmatprep.mubr.bf16.mxu0 0
  %1291 = vmatmul.mubr.bf16.gmra.mrb[0].mxu0 %v1240
  %v1292 = vpop.f32.mrb[0].mxu0
  %v1293 = vadd.f32 %v1188, %v1292
  %v1294 = vpop.f32.mrb[0].mxu0
  %v1295 = vadd.f32 %v1190, %v1294
  %v1296 = vpop.f32.mrb[0].mxu0
  %v1297 = vadd.f32 %v1192, %v1296
  %v1298 = vpop.f32.mrb[0].mxu0
  %v1299 = vadd.f32 %v1194, %v1298
  %1300 = vmatprep.mubr.bf16.mxu0 0
  %1301 = vmatmul.mubr.bf16.gmra.mrb[0].mxu0 %v1243
  %v1302 = vpop.f32.mrb[0].mxu0
  %v1303 = vadd.f32 %v1198, %v1302
  %v1304 = vpop.f32.mrb[0].mxu0
  %v1305 = vadd.f32 %v1200, %v1304
  %v1306 = vpop.f32.mrb[0].mxu0
  %v1307 = vadd.f32 %v1202, %v1306
  %v1308 = vpop.f32.mrb[0].mxu0
  %v1309 = vadd.f32 %v1204, %v1308
  %1310 = vmatprep.mubr.bf16.mxu0 0
  %1311 = vmatmul.mubr.bf16.gmra.mrb[0].mxu0 %v1246
  %v1312 = vpop.f32.mrb[0].mxu0
  %v1313 = vadd.f32 %v1208, %v1312
  %v1314 = vpop.f32.mrb[0].mxu0
  %v1315 = vadd.f32 %v1210, %v1314
  %v1316 = vpop.f32.mrb[0].mxu0
  %v1317 = vadd.f32 %v1212, %v1316
  %v1318 = vpop.f32.mrb[0].mxu0
  %v1319 = vadd.f32 %v1214, %v1318
  %1320 = vdwg.mxu0
  %1322 = vset.pattern.permute.xlu0 0
  %1323 = vperm.xlu0 %1322, %v70
  %v1324 = vpop.permute.xlu0 %1323
  %1327 = vset.pattern.permute.xlu0 0
  %1328 = vperm.xlu0 %1327, %v71
  %v1329 = vpop.permute.xlu0 %1328
  %1332 = vset.pattern.permute.xlu0 0
  %1333 = vperm.xlu0 %1332, %v72
  %v1334 = vpop.permute.xlu0 %1333
  %1337 = vset.pattern.permute.xlu0 0
  %1338 = vperm.xlu0 %1337, %v73
  %v1339 = vpop.permute.xlu0 %1338
  %1342 = vset.pattern.permute.xlu0 0
  %1343 = vperm.xlu0 %1342, %v74
  %v1344 = vpop.permute.xlu0 %1343
  %1347 = vset.pattern.permute.xlu0 0
  %1348 = vperm.xlu0 %1347, %v75
  %v1349 = vpop.permute.xlu0 %1348
  %1352 = vset.pattern.permute.xlu0 0
  %1353 = vperm.xlu0 %1352, %v76
  %v1354 = vpop.permute.xlu0 %1353
  %1357 = vset.pattern.permute.xlu0 0
  %1358 = vperm.xlu0 %1357, %v77
  %v1359 = vpop.permute.xlu0 %1358
  %v1361 = vadd.f32 %v1283, %v1324
  %v1362 = vadd.f32 %v1285, %v1324
  %v1363 = vadd.f32 %v1287, %v1329
  %v1364 = vadd.f32 %v1289, %v1329
  %v1365 = vadd.f32 %v1293, %v1334
  %v1366 = vadd.f32 %v1295, %v1334
  %v1367 = vadd.f32 %v1297, %v1339
  %v1368 = vadd.f32 %v1299, %v1339
  %v1369 = vadd.f32 %v1303, %v1344
  %v1370 = vadd.f32 %v1305, %v1344
  %v1371 = vadd.f32 %v1307, %v1349
  %v1372 = vadd.f32 %v1309, %v1349
  %v1373 = vadd.f32 %v1313, %v1354
  %v1374 = vadd.f32 %v1315, %v1354
  %v1375 = vadd.f32 %v1317, %v1359
  %v1376 = vadd.f32 %v1319, %v1359
  %1377 = vst [vmem:[%s8] sm:$0xff] %v1361
  %1378 = vst [vmem:[%s8 + $0x8] sm:$0xff] %v1362
  %1379 = vst [vmem:[%s8 + $0x10] sm:$0xff] %v1363
  %1380 = vst [vmem:[%s8 + $0x18] sm:$0xff] %v1364
  %1381 = vst [vmem:[%s8 + $0x20] sm:$0xff] %v1365
  %1382 = vst [vmem:[%s8 + $0x28] sm:$0xff] %v1366
  %1383 = vst [vmem:[%s8 + $0x30] sm:$0xff] %v1367
  %1384 = vst [vmem:[%s8 + $0x38] sm:$0xff] %v1368
  %1385 = vst [vmem:[%s8 + $0x40] sm:$0xff] %v1369
  %1386 = vst [vmem:[%s8 + $0x48] sm:$0xff] %v1370
  %1387 = vst [vmem:[%s8 + $0x50] sm:$0xff] %v1371
  %1388 = vst [vmem:[%s8 + $0x58] sm:$0xff] %v1372
  %1389 = vst [vmem:[%s8 + $0x60] sm:$0xff] %v1373
  %1390 = vst [vmem:[%s8 + $0x68] sm:$0xff] %v1374
  %1391 = vst [vmem:[%s8 + $0x70] sm:$0xff] %v1375
  %1392 = vst [vmem:[%s8 + $0x78] sm:$0xff] %v1376
  %s1393 = scalar_lea.vmem %s0, 128
  %v1394 = vld [vmem:[%s1393] sm:$0xff]
  %v1395 = vld [vmem:[%s1393 + $0x8] sm:$0xff]
  %v1396 = vld [vmem:[%s1393 + $0x10] sm:$0xff]
  %v1397 = vld [vmem:[%s1393 + $0x18] sm:$0xff]
  %v1398 = vld [vmem:[%s1393 + $0x20] sm:$0xff]
  %v1399 = vld [vmem:[%s1393 + $0x28] sm:$0xff]
  %v1400 = vld [vmem:[%s1393 + $0x30] sm:$0xff]
  %v1401 = vld [vmem:[%s1393 + $0x38] sm:$0xff]
  %v1402 = vld [vmem:[%s1393 + $0x40] sm:$0xff]
  %v1403 = vld [vmem:[%s1393 + $0x48] sm:$0xff]
  %v1404 = vld [vmem:[%s1393 + $0x50] sm:$0xff]
  %v1405 = vld [vmem:[%s1393 + $0x58] sm:$0xff]
  %v1406 = vld [vmem:[%s1393 + $0x60] sm:$0xff]
  %v1407 = vld [vmem:[%s1393 + $0x68] sm:$0xff]
  %v1408 = vld [vmem:[%s1393 + $0x70] sm:$0xff]
  %v1409 = vld [vmem:[%s1393 + $0x78] sm:$0xff]
  %v1410 = vadd.f32 %v1394, %v1395
  %v1411 = vadd.f32 %v1410, %v1396
  %v1412 = vadd.f32 %v1411, %v1397
  %v1413 = vadd.f32 %v1412, %v1398
  %v1414 = vadd.f32 %v1413, %v1399
  %v1415 = vadd.f32 %v1414, %v1400
  %v1416 = vadd.f32 %v1415, %v1401
  %1417 = vadd.xlane.f32.xlu0 %v1416
  %v1418 = vpop.xlane.xlu0 %1417
  %v1419 = vrot.slane %v1418, 4
  %v1420 = vadd.f32 %v1418, %v1419
  %v1421 = vrot.slane %v1420, 2
  %v1422 = vadd.f32 %v1420, %v1421
  %v1423 = vrot.slane %v1422, 1
  %v1424 = vadd.f32 %v1422, %v1423
  %s1425 = vtos %v1424
  %v1426 = vrcp.pop 8192.0
  %s1427 = vtos %v1426
  %s1428 = smul.f32 %s1425, %s1427
  %v1429 = vmul.f32 %v1394, %v1394
  %v1430 = vmul.f32 %v1395, %v1395
  %v1431 = vmul.f32 %v1396, %v1396
  %v1432 = vmul.f32 %v1397, %v1397
  %v1433 = vmul.f32 %v1398, %v1398
  %v1434 = vmul.f32 %v1399, %v1399
  %v1435 = vmul.f32 %v1400, %v1400
  %v1436 = vmul.f32 %v1401, %v1401
  %v1437 = vadd.f32 %v1429, %v1430
  %v1438 = vadd.f32 %v1437, %v1431
  %v1439 = vadd.f32 %v1438, %v1432
  %v1440 = vadd.f32 %v1439, %v1433
  %v1441 = vadd.f32 %v1440, %v1434
  %v1442 = vadd.f32 %v1441, %v1435
  %v1443 = vadd.f32 %v1442, %v1436
  %1444 = vadd.xlane.f32.xlu0 %v1443
  %v1445 = vpop.xlane.xlu0 %1444
  %v1446 = vrot.slane %v1445, 4
  %v1447 = vadd.f32 %v1445, %v1446
  %v1448 = vrot.slane %v1447, 2
  %v1449 = vadd.f32 %v1447, %v1448
  %v1450 = vrot.slane %v1449, 1
  %v1451 = vadd.f32 %v1449, %v1450
  %s1452 = vtos %v1451
  %v1453 = vrcp.pop 8192.0
  %s1454 = vtos %v1453
  %s1455 = smul.f32 %s1452, %s1454
  %s1456 = smul.f32 %s1428, %s1428
  %s1457 = ssub.f32 %s1455, %s1456
  %v1458 = vstv %s1428
  %v1459 = vsub.f32 %v1394, %v1458
  %v1460 = vsub.f32 %v1395, %v1458
  %v1461 = vsub.f32 %v1396, %v1458
  %v1462 = vsub.f32 %v1397, %v1458
  %v1463 = vsub.f32 %v1398, %v1458
  %v1464 = vsub.f32 %v1399, %v1458
  %v1465 = vsub.f32 %v1400, %v1458
  %v1466 = vsub.f32 %v1401, %v1458
  %s1467 = sadd.f32 %s1457, 1e-05
  %v1468 = vstv %s1467
  %v1469 = vrsqrt.pop %v1468
  %s1470 = vtos %v1469
  %v1471 = vstv %s1470
  %v1472 = vmul.f32 %v1459, %v1471
  %v1473 = vmul.f32 %v1460, %v1471
  %v1474 = vmul.f32 %v1461, %v1471
  %v1475 = vmul.f32 %v1462, %v1471
  %v1476 = vmul.f32 %v1463, %v1471
  %v1477 = vmul.f32 %v1464, %v1471
  %v1478 = vmul.f32 %v1465, %v1471
  %v1479 = vmul.f32 %v1466, %v1471
  %v1480 = vmul.f32 %v1472, %v167
  %v1481 = vmul.f32 %v1473, %v167
  %v1482 = vmul.f32 %v1474, %v172
  %v1483 = vmul.f32 %v1475, %v172
  %v1484 = vmul.f32 %v1476, %v177
  %v1485 = vmul.f32 %v1477, %v177
  %v1486 = vmul.f32 %v1478, %v182
  %v1487 = vmul.f32 %v1479, %v182
  %v1488 = vadd.f32 %v1480, %v195
  %v1489 = vadd.f32 %v1481, %v195
  %v1490 = vadd.f32 %v1482, %v200
  %v1491 = vadd.f32 %v1483, %v200
  %v1492 = vadd.f32 %v1484, %v205
  %v1493 = vadd.f32 %v1485, %v205
  %v1494 = vadd.f32 %v1486, %v210
  %v1495 = vadd.f32 %v1487, %v210
  %v1496 = vpack.c.bf16 %v1490, %v1488
  %v1497 = vpack.c.bf16 %v1491, %v1489
  %v1498 = vpack.c.bf16 %v1494, %v1492
  %v1499 = vpack.c.bf16 %v1495, %v1493
  %1500 = vmatprep.subr.bf16.mxu0 %v1497
  %1501 = vmatpush1.bf16.msra.mxu0 %v1496
  %1502 = vmatprep.subr.bf16.mxu0 %v1499
  %1503 = vmatpush1.bf16.msra.mxu0 %v1498
  %1504 = vmatprep.subr.bf16.mxu0 0
  %1505 = vmatpush1.bf16.msra.mxu0 0
  %1506 = vmatprep.subr.bf16.mxu0 0
  %1507 = vmatpush1.bf16.msra.mxu0 0
  %1508 = vmatprep.subr.bf16.mxu0 0
  %1509 = vmatpush1.bf16.msra.mxu0 0
  %1510 = vmatprep.subr.bf16.mxu0 0
  %1511 = vmatpush1.bf16.msra.mxu0 0
  %1512 = vmatprep.subr.bf16.mxu0 0
  %1513 = vmatpush1.bf16.msra.mxu0 0
  %1514 = vmatprep.subr.bf16.mxu0 0
  %1515 = vmatpush1.bf16.msra.mxu0 0
  %1516 = vmatprep.subr.bf16.mxu0 0
  %1517 = vmatpush1.bf16.msra.mxu0 0
  %1518 = vmatprep.subr.bf16.mxu0 0
  %1519 = vmatpush1.bf16.msra.mxu0 0
  %1520 = vmatprep.subr.bf16.mxu0 0
  %1521 = vmatpush1.bf16.msra.mxu0 0
  %1522 = vmatprep.subr.bf16.mxu0 0
  %1523 = vmatpush1.bf16.msra.mxu0 0
  %1524 = vmatprep.subr.bf16.mxu0 0
  %1525 = vmatpush1.bf16.msra.mxu0 0
  %1526 = vmatprep.subr.bf16.mxu0 0
  %1527 = vmatpush1.bf16.msra.mxu0 0
  %1528 = vmatprep.subr.bf16.mxu0 0
  %1529 = vmatpush1.bf16.msra.mxu0 0
  %1530 = vmatprep.subr.bf16.mxu0 0
  %1531 = vmatpush1.bf16.msra.mxu0 0
  %1532 = vmatprep.mubr.bf16.mxu0 0
  %1533 = vmatmul.mubr.bf16.gmra.mrb[0].mxu0 %v286
  %v1534 = vpop.f32.mrb[0].mxu0
  %v1535 = vadd.f32 %v227, %v1534
  %v1536 = vpop.f32.mrb[0].mxu0
  %v1537 = vadd.f32 %v227, %v1536
  %v1538 = vpop.f32.mrb[0].mxu0
  %v1539 = vadd.f32 %v232, %v1538
  %v1540 = vpop.f32.mrb[0].mxu0
  %v1541 = vadd.f32 %v232, %v1540
  %1542 = vmatprep.mubr.bf16.mxu0 0
  %1543 = vmatmul.mubr.bf16.gmra.mrb[0].mxu0 %v289
  %v1544 = vpop.f32.mrb[0].mxu0
  %v1545 = vadd.f32 %v237, %v1544
  %v1546 = vpop.f32.mrb[0].mxu0
  %v1547 = vadd.f32 %v237, %v1546
  %v1548 = vpop.f32.mrb[0].mxu0
  %v1549 = vadd.f32 %v242, %v1548
  %v1550 = vpop.f32.mrb[0].mxu0
  %v1551 = vadd.f32 %v242, %v1550
  %1552 = vmatprep.mubr.bf16.mxu0 0
  %1553 = vmatmul.mubr.bf16.gmra.mrb[0].mxu0 %v292
  %v1554 = vpop.f32.mrb[0].mxu0
  %v1555 = vadd.f32 %v247, %v1554
  %v1556 = vpop.f32.mrb[0].mxu0
  %v1557 = vadd.f32 %v247, %v1556
  %v1558 = vpop.f32.mrb[0].mxu0
  %v1559 = vadd.f32 %v252, %v1558
  %v1560 = vpop.f32.mrb[0].mxu0
  %v1561 = vadd.f32 %v252, %v1560
  %1562 = vmatprep.mubr.bf16.mxu0 0
  %1563 = vmatmul.mubr.bf16.gmra.mrb[0].mxu0 %v295
  %v1564 = vpop.f32.mrb[0].mxu0
  %v1565 = vadd.f32 %v257, %v1564
  %v1566 = vpop.f32.mrb[0].mxu0
  %v1567 = vadd.f32 %v257, %v1566
  %v1568 = vpop.f32.mrb[0].mxu0
  %v1569 = vadd.f32 %v262, %v1568
  %v1570 = vpop.f32.mrb[0].mxu0
  %v1571 = vadd.f32 %v262, %v1570
  %1572 = vdwg.mxu0
  %v1573 = vpack.c.bf16 %v1539, %v1535
  %v1574 = vpack.c.bf16 %v1541, %v1537
  %v1575 = vpack.c.bf16 %v1549, %v1545
  %v1576 = vpack.c.bf16 %v1551, %v1547
  %v1577 = vpack.c.bf16 %v1559, %v1555
  %v1578 = vpack.c.bf16 %v1561, %v1557
  %v1579 = vpack.c.bf16 %v1569, %v1565
  %v1580 = vpack.c.bf16 %v1571, %v1567
  %1581 = vxpose.xlu0.c.b16.start [1/8] %v1575, 128
  %1582 = vxpose.xlu0.c.b16.cont [2/8] 0, 128
  %1583 = vxpose.xlu0.c.b16.cont [3/8] 0, 128
  %1584 = vxpose.xlu0.c.b16.cont [4/8] 0, 128
  %1585 = vxpose.xlu0.c.b16.cont [5/8] 0, 128
  %1586 = vxpose.xlu0.c.b16.cont [6/8] 0, 128
  %1587 = vxpose.xlu0.c.b16.cont [7/8] 0, 128
  %1588 = vxpose.xlu0.c.b16.end [8/8] 0, 128
  %v1589 = vpop.trf.xlu0
  %v1590 = vpop.trf.xlu0
  %v1591 = vpop.trf.xlu0
  %v1592 = vpop.trf.xlu0
  %v1593 = vpop.trf.xlu0
  %v1594 = vpop.trf.xlu0
  %v1595 = vpop.trf.xlu0
  %v1596 = vpop.trf.xlu0
  %1597 = vxpose.xlu0.c.b16.start [1/8] %v1576, 128
  %1598 = vxpose.xlu0.c.b16.cont [2/8] 0, 128
  %1599 = vxpose.xlu0.c.b16.cont [3/8] 0, 128
  %1600 = vxpose.xlu0.c.b16.cont [4/8] 0, 128
  %1601 = vxpose.xlu0.c.b16.cont [5/8] 0, 128
  %1602 = vxpose.xlu0.c.b16.cont [6/8] 0, 128
  %1603 = vxpose.xlu0.c.b16.cont [7/8] 0, 128
  %1604 = vxpose.xlu0.c.b16.end [8/8] 0, 128
  %v1605 = vpop.trf.xlu0
  %v1606 = vpop.trf.xlu0
  %v1607 = vpop.trf.xlu0
  %v1608 = vpop.trf.xlu0
  %v1609 = vpop.trf.xlu0
  %v1610 = vpop.trf.xlu0
  %v1611 = vpop.trf.xlu0
  %v1612 = vpop.trf.xlu0
  %v1614 = vsel %vm410, %v1589, 0
  %v1617 = vsel %vm410, %v1590, 0
  %v1620 = vsel %vm410, %v1591, 0
  %v1623 = vsel %vm410, %v1592, 0
  %v1626 = vsel %vm410, %v1593, 0
  %v1629 = vsel %vm410, %v1594, 0
  %v1632 = vsel %vm410, %v1595, 0
  %v1635 = vsel %vm410, %v1596, 0
  %v1638 = vsel %vm410, %v1605, 0
  %v1641 = vsel %vm410, %v1606, 0
  %v1644 = vsel %vm410, %v1607, 0
  %v1647 = vsel %vm410, %v1608, 0
  %v1650 = vsel %vm410, %v1609, 0
  %v1653 = vsel %vm410, %v1610, 0
  %v1656 = vsel %vm410, %v1611, 0
  %v1659 = vsel %vm410, %v1612, 0
  %1661 = vmatprep.subr.bf16.mxu0 %v1574
  %1662 = vmatpush1.bf16.msra.mxu0 %v1573
  %1663 = vmatprep.subr.bf16.mxu0 0
  %1664 = vmatpush1.bf16.msra.mxu0 0
  %1665 = vmatprep.subr.bf16.mxu0 0
  %1666 = vmatpush1.bf16.msra.mxu0 0
  %1667 = vmatprep.subr.bf16.mxu0 0
  %1668 = vmatpush1.bf16.msra.mxu0 0
  %1669 = vmatprep.subr.bf16.mxu0 0
  %1670 = vmatpush1.bf16.msra.mxu0 0
  %1671 = vmatprep.subr.bf16.mxu0 0
  %1672 = vmatpush1.bf16.msra.mxu0 0
  %1673 = vmatprep.subr.bf16.mxu0 0
  %1674 = vmatpush1.bf16.msra.mxu0 0
  %1675 = vmatprep.subr.bf16.mxu0 0
  %1676 = vmatpush1.bf16.msra.mxu0 0
  %1677 = vmatprep.subr.bf16.mxu0 0
  %1678 = vmatpush1.bf16.msra.mxu0 0
  %1679 = vmatprep.subr.bf16.mxu0 0
  %1680 = vmatpush1.bf16.msra.mxu0 0
  %1681 = vmatprep.subr.bf16.mxu0 0
  %1682 = vmatpush1.bf16.msra.mxu0 0
  %1683 = vmatprep.subr.bf16.mxu0 0
  %1684 = vmatpush1.bf16.msra.mxu0 0
  %1685 = vmatprep.subr.bf16.mxu0 0
  %1686 = vmatpush1.bf16.msra.mxu0 0
  %1687 = vmatprep.subr.bf16.mxu0 0
  %1688 = vmatpush1.bf16.msra.mxu0 0
  %1689 = vmatprep.subr.bf16.mxu0 0
  %1690 = vmatpush1.bf16.msra.mxu0 0
  %1691 = vmatprep.subr.bf16.mxu0 0
  %1692 = vmatpush1.bf16.msra.mxu0 0
  %1693 = vmatprep.mubr.bf16.mxu0 0
  %1694 = vmatmul.mubr.bf16.gmra.mrb[0].mxu0 %v1614
  %v1695 = vpop.f32.mrb[0].mxu0
  %v1696 = vadd.f32 0.0, %v1695
  %v1697 = vpop.f32.mrb[0].mxu0
  %v1698 = vadd.f32 0.0, %v1697
  %v1699 = vpop.f32.mrb[0].mxu0
  %v1700 = vadd.f32 0.0, %v1699
  %v1701 = vpop.f32.mrb[0].mxu0
  %v1702 = vadd.f32 0.0, %v1701
  %1703 = vmatprep.mubr.bf16.mxu0 0
  %1704 = vmatmul.mubr.bf16.gmra.mrb[0].mxu0 %v1617
  %v1705 = vpop.f32.mrb[0].mxu0
  %v1706 = vadd.f32 0.0, %v1705
  %v1707 = vpop.f32.mrb[0].mxu0
  %v1708 = vadd.f32 0.0, %v1707
  %v1709 = vpop.f32.mrb[0].mxu0
  %v1710 = vadd.f32 0.0, %v1709
  %v1711 = vpop.f32.mrb[0].mxu0
  %v1712 = vadd.f32 0.0, %v1711
  %1713 = vmatprep.mubr.bf16.mxu0 0
  %1714 = vmatmul.mubr.bf16.gmra.mrb[0].mxu0 %v1620
  %v1715 = vpop.f32.mrb[0].mxu0
  %v1716 = vadd.f32 0.0, %v1715
  %v1717 = vpop.f32.mrb[0].mxu0
  %v1718 = vadd.f32 0.0, %v1717
  %v1719 = vpop.f32.mrb[0].mxu0
  %v1720 = vadd.f32 0.0, %v1719
  %v1721 = vpop.f32.mrb[0].mxu0
  %v1722 = vadd.f32 0.0, %v1721
  %1723 = vmatprep.mubr.bf16.mxu0 0
  %1724 = vmatmul.mubr.bf16.gmra.mrb[0].mxu0 %v1623
  %v1725 = vpop.f32.mrb[0].mxu0
  %v1726 = vadd.f32 0.0, %v1725
  %v1727 = vpop.f32.mrb[0].mxu0
  %v1728 = vadd.f32 0.0, %v1727
  %v1729 = vpop.f32.mrb[0].mxu0
  %v1730 = vadd.f32 0.0, %v1729
  %v1731 = vpop.f32.mrb[0].mxu0
  %v1732 = vadd.f32 0.0, %v1731
  %1733 = vmatprep.mubr.bf16.mxu0 0
  %1734 = vmatmul.mubr.bf16.gmra.mrb[0].mxu0 %v1626
  %v1735 = vpop.f32.mrb[0].mxu0
  %v1736 = vadd.f32 0.0, %v1735
  %v1737 = vpop.f32.mrb[0].mxu0
  %v1738 = vadd.f32 0.0, %v1737
  %v1739 = vpop.f32.mrb[0].mxu0
  %v1740 = vadd.f32 0.0, %v1739
  %v1741 = vpop.f32.mrb[0].mxu0
  %v1742 = vadd.f32 0.0, %v1741
  %1743 = vmatprep.mubr.bf16.mxu0 0
  %1744 = vmatmul.mubr.bf16.gmra.mrb[0].mxu0 %v1629
  %v1745 = vpop.f32.mrb[0].mxu0
  %v1746 = vadd.f32 0.0, %v1745
  %v1747 = vpop.f32.mrb[0].mxu0
  %v1748 = vadd.f32 0.0, %v1747
  %v1749 = vpop.f32.mrb[0].mxu0
  %v1750 = vadd.f32 0.0, %v1749
  %v1751 = vpop.f32.mrb[0].mxu0
  %v1752 = vadd.f32 0.0, %v1751
  %1753 = vmatprep.mubr.bf16.mxu0 0
  %1754 = vmatmul.mubr.bf16.gmra.mrb[0].mxu0 %v1632
  %v1755 = vpop.f32.mrb[0].mxu0
  %v1756 = vadd.f32 0.0, %v1755
  %v1757 = vpop.f32.mrb[0].mxu0
  %v1758 = vadd.f32 0.0, %v1757
  %v1759 = vpop.f32.mrb[0].mxu0
  %v1760 = vadd.f32 0.0, %v1759
  %v1761 = vpop.f32.mrb[0].mxu0
  %v1762 = vadd.f32 0.0, %v1761
  %1763 = vmatprep.mubr.bf16.mxu0 0
  %1764 = vmatmul.mubr.bf16.gmra.mrb[0].mxu0 %v1635
  %v1765 = vpop.f32.mrb[0].mxu0
  %v1766 = vadd.f32 0.0, %v1765
  %v1767 = vpop.f32.mrb[0].mxu0
  %v1768 = vadd.f32 0.0, %v1767
  %v1769 = vpop.f32.mrb[0].mxu0
  %v1770 = vadd.f32 0.0, %v1769
  %v1771 = vpop.f32.mrb[0].mxu0
  %v1772 = vadd.f32 0.0, %v1771
  %1773 = vmatprep.mubr.bf16.mxu0 0
  %1774 = vmatmul.mubr.bf16.gmra.mrb[0].mxu0 %v1638
  %v1775 = vpop.f32.mrb[0].mxu0
  %v1776 = vadd.f32 0.0, %v1775
  %v1777 = vpop.f32.mrb[0].mxu0
  %v1778 = vadd.f32 0.0, %v1777
  %v1779 = vpop.f32.mrb[0].mxu0
  %v1780 = vadd.f32 0.0, %v1779
  %v1781 = vpop.f32.mrb[0].mxu0
  %v1782 = vadd.f32 0.0, %v1781
  %1783 = vmatprep.mubr.bf16.mxu0 0
  %1784 = vmatmul.mubr.bf16.gmra.mrb[0].mxu0 %v1641
  %v1785 = vpop.f32.mrb[0].mxu0
  %v1786 = vadd.f32 0.0, %v1785
  %v1787 = vpop.f32.mrb[0].mxu0
  %v1788 = vadd.f32 0.0, %v1787
  %v1789 = vpop.f32.mrb[0].mxu0
  %v1790 = vadd.f32 0.0, %v1789
  %v1791 = vpop.f32.mrb[0].mxu0
  %v1792 = vadd.f32 0.0, %v1791
  %1793 = vmatprep.mubr.bf16.mxu0 0
  %1794 = vmatmul.mubr.bf16.gmra.mrb[0].mxu0 %v1644
  %v1795 = vpop.f32.mrb[0].mxu0
  %v1796 = vadd.f32 0.0, %v1795
  %v1797 = vpop.f32.mrb[0].mxu0
  %v1798 = vadd.f32 0.0, %v1797
  %v1799 = vpop.f32.mrb[0].mxu0
  %v1800 = vadd.f32 0.0, %v1799
  %v1801 = vpop.f32.mrb[0].mxu0
  %v1802 = vadd.f32 0.0, %v1801
  %1803 = vmatprep.mubr.bf16.mxu0 0
  %1804 = vmatmul.mubr.bf16.gmra.mrb[0].mxu0 %v1647
  %v1805 = vpop.f32.mrb[0].mxu0
  %v1806 = vadd.f32 0.0, %v1805
  %v1807 = vpop.f32.mrb[0].mxu0
  %v1808 = vadd.f32 0.0, %v1807
  %v1809 = vpop.f32.mrb[0].mxu0
  %v1810 = vadd.f32 0.0, %v1809
  %v1811 = vpop.f32.mrb[0].mxu0
  %v1812 = vadd.f32 0.0, %v1811
  %1813 = vmatprep.mubr.bf16.mxu0 0
  %1814 = vmatmul.mubr.bf16.gmra.mrb[0].mxu0 %v1650
  %v1815 = vpop.f32.mrb[0].mxu0
  %v1816 = vadd.f32 0.0, %v1815
  %v1817 = vpop.f32.mrb[0].mxu0
  %v1818 = vadd.f32 0.0, %v1817
  %v1819 = vpop.f32.mrb[0].mxu0
  %v1820 = vadd.f32 0.0, %v1819
  %v1821 = vpop.f32.mrb[0].mxu0
  %v1822 = vadd.f32 0.0, %v1821
  %1823 = vmatprep.mubr.bf16.mxu0 0
  %1824 = vmatmul.mubr.bf16.gmra.mrb[0].mxu0 %v1653
  %v1825 = vpop.f32.mrb[0].mxu0
  %v1826 = vadd.f32 0.0, %v1825
  %v1827 = vpop.f32.mrb[0].mxu0
  %v1828 = vadd.f32 0.0, %v1827
  %v1829 = vpop.f32.mrb[0].mxu0
  %v1830 = vadd.f32 0.0, %v1829
  %v1831 = vpop.f32.mrb[0].mxu0
  %v1832 = vadd.f32 0.0, %v1831
  %1833 = vmatprep.mubr.bf16.mxu0 0
  %1834 = vmatmul.mubr.bf16.gmra.mrb[0].mxu0 %v1656
  %v1835 = vpop.f32.mrb[0].mxu0
  %v1836 = vadd.f32 0.0, %v1835
  %v1837 = vpop.f32.mrb[0].mxu0
  %v1838 = vadd.f32 0.0, %v1837
  %v1839 = vpop.f32.mrb[0].mxu0
  %v1840 = vadd.f32 0.0, %v1839
  %v1841 = vpop.f32.mrb[0].mxu0
  %v1842 = vadd.f32 0.0, %v1841
  %1843 = vmatprep.mubr.bf16.mxu0 0
  %1844 = vmatmul.mubr.bf16.gmra.mrb[0].mxu0 %v1659
  %v1845 = vpop.f32.mrb[0].mxu0
  %v1846 = vadd.f32 0.0, %v1845
  %v1847 = vpop.f32.mrb[0].mxu0
  %v1848 = vadd.f32 0.0, %v1847
  %v1849 = vpop.f32.mrb[0].mxu0
  %v1850 = vadd.f32 0.0, %v1849
  %v1851 = vpop.f32.mrb[0].mxu0
  %v1852 = vadd.f32 0.0, %v1851
  %1853 = vdwg.mxu0
  %v1854 = vmax.f32 %v1696, %v1706
  %v1855 = vmax.f32 %v1700, %v1710
  %v1856 = vmax.f32 %v1854, %v1716
  %v1857 = vmax.f32 %v1855, %v1720
  %v1858 = vmax.f32 %v1856, %v1726
  %v1859 = vmax.f32 %v1857, %v1730
  %v1860 = vmax.f32 %v1858, %v1736
  %v1861 = vmax.f32 %v1859, %v1740
  %v1862 = vmax.f32 %v1860, %v1746
  %v1863 = vmax.f32 %v1861, %v1750
  %v1864 = vmax.f32 %v1862, %v1756
  %v1865 = vmax.f32 %v1863, %v1760
  %v1866 = vmax.f32 %v1864, %v1766
  %v1867 = vmax.f32 %v1865, %v1770
  %v1868 = vmax.f32 %v1866, %v1776
  %v1869 = vmax.f32 %v1867, %v1780
  %v1870 = vmax.f32 %v1868, %v1786
  %v1871 = vmax.f32 %v1869, %v1790
  %v1872 = vmax.f32 %v1870, %v1796
  %v1873 = vmax.f32 %v1871, %v1800
  %v1874 = vmax.f32 %v1872, %v1806
  %v1875 = vmax.f32 %v1873, %v1810
  %v1876 = vmax.f32 %v1874, %v1816
  %v1877 = vmax.f32 %v1875, %v1820
  %v1878 = vmax.f32 %v1876, %v1826
  %v1879 = vmax.f32 %v1877, %v1830
  %v1880 = vmax.f32 %v1878, %v1836
  %v1881 = vmax.f32 %v1879, %v1840
  %v1882 = vmax.f32 %v1880, %v1846
  %v1883 = vmax.f32 %v1881, %v1850
  %v1884 = vmax.f32 %v1882, %v1883
  %v1885 = vrot.slane %v1884, 4
  %v1886 = vmax.f32 %v1884, %v1885
  %v1887 = vrot.slane %v1886, 2
  %v1888 = vmax.f32 %v1886, %v1887
  %v1889 = vrot.slane %v1888, 1
  %v1890 = vmax.f32 %v1888, %v1889
  %v1891 = vmax.f32 %v1698, %v1708
  %v1892 = vmax.f32 %v1702, %v1712
  %v1893 = vmax.f32 %v1891, %v1718
  %v1894 = vmax.f32 %v1892, %v1722
  %v1895 = vmax.f32 %v1893, %v1728
  %v1896 = vmax.f32 %v1894, %v1732
  %v1897 = vmax.f32 %v1895, %v1738
  %v1898 = vmax.f32 %v1896, %v1742
  %v1899 = vmax.f32 %v1897, %v1748
  %v1900 = vmax.f32 %v1898, %v1752
  %v1901 = vmax.f32 %v1899, %v1758
  %v1902 = vmax.f32 %v1900, %v1762
  %v1903 = vmax.f32 %v1901, %v1768
  %v1904 = vmax.f32 %v1902, %v1772
  %v1905 = vmax.f32 %v1903, %v1778
  %v1906 = vmax.f32 %v1904, %v1782
  %v1907 = vmax.f32 %v1905, %v1788
  %v1908 = vmax.f32 %v1906, %v1792
  %v1909 = vmax.f32 %v1907, %v1798
  %v1910 = vmax.f32 %v1908, %v1802
  %v1911 = vmax.f32 %v1909, %v1808
  %v1912 = vmax.f32 %v1910, %v1812
  %v1913 = vmax.f32 %v1911, %v1818
  %v1914 = vmax.f32 %v1912, %v1822
  %v1915 = vmax.f32 %v1913, %v1828
  %v1916 = vmax.f32 %v1914, %v1832
  %v1917 = vmax.f32 %v1915, %v1838
  %v1918 = vmax.f32 %v1916, %v1842
  %v1919 = vmax.f32 %v1917, %v1848
  %v1920 = vmax.f32 %v1918, %v1852
  %v1921 = vmax.f32 %v1919, %v1920
  %v1922 = vrot.slane %v1921, 4
  %v1923 = vmax.f32 %v1921, %v1922
  %v1924 = vrot.slane %v1923, 2
  %v1925 = vmax.f32 %v1923, %v1924
  %v1926 = vrot.slane %v1925, 1
  %v1927 = vmax.f32 %v1925, %v1926
  %v1928 = vsub.f32 %v1696, %v1890
  %v1929 = vsub.f32 %v1698, %v1927
  %v1930 = vsub.f32 %v1700, %v1890
  %v1931 = vsub.f32 %v1702, %v1927
  %v1932 = vsub.f32 %v1706, %v1890
  %v1933 = vsub.f32 %v1708, %v1927
  %v1934 = vsub.f32 %v1710, %v1890
  %v1935 = vsub.f32 %v1712, %v1927
  %v1936 = vsub.f32 %v1716, %v1890
  %v1937 = vsub.f32 %v1718, %v1927
  %v1938 = vsub.f32 %v1720, %v1890
  %v1939 = vsub.f32 %v1722, %v1927
  %v1940 = vsub.f32 %v1726, %v1890
  %v1941 = vsub.f32 %v1728, %v1927
  %v1942 = vsub.f32 %v1730, %v1890
  %v1943 = vsub.f32 %v1732, %v1927
  %v1944 = vsub.f32 %v1736, %v1890
  %v1945 = vsub.f32 %v1738, %v1927
  %v1946 = vsub.f32 %v1740, %v1890
  %v1947 = vsub.f32 %v1742, %v1927
  %v1948 = vsub.f32 %v1746, %v1890
  %v1949 = vsub.f32 %v1748, %v1927
  %v1950 = vsub.f32 %v1750, %v1890
  %v1951 = vsub.f32 %v1752, %v1927
  %v1952 = vsub.f32 %v1756, %v1890
  %v1953 = vsub.f32 %v1758, %v1927
  %v1954 = vsub.f32 %v1760, %v1890
  %v1955 = vsub.f32 %v1762, %v1927
  %v1956 = vsub.f32 %v1766, %v1890
  %v1957 = vsub.f32 %v1768, %v1927
  %v1958 = vsub.f32 %v1770, %v1890
  %v1959 = vsub.f32 %v1772, %v1927
  %v1960 = vsub.f32 %v1776, %v1890
  %v1961 = vsub.f32 %v1778, %v1927
  %v1962 = vsub.f32 %v1780, %v1890
  %v1963 = vsub.f32 %v1782, %v1927
  %v1964 = vsub.f32 %v1786, %v1890
  %v1965 = vsub.f32 %v1788, %v1927
  %v1966 = vsub.f32 %v1790, %v1890
  %v1967 = vsub.f32 %v1792, %v1927
  %v1968 = vsub.f32 %v1796, %v1890
  %v1969 = vsub.f32 %v1798, %v1927
  %v1970 = vsub.f32 %v1800, %v1890
  %v1971 = vsub.f32 %v1802, %v1927
  %v1972 = vsub.f32 %v1806, %v1890
  %v1973 = vsub.f32 %v1808, %v1927
  %v1974 = vsub.f32 %v1810, %v1890
  %v1975 = vsub.f32 %v1812, %v1927
  %v1976 = vsub.f32 %v1816, %v1890
  %v1977 = vsub.f32 %v1818, %v1927
  %v1978 = vsub.f32 %v1820, %v1890
  %v1979 = vsub.f32 %v1822, %v1927
  %v1980 = vsub.f32 %v1826, %v1890
  %v1981 = vsub.f32 %v1828, %v1927
  %v1982 = vsub.f32 %v1830, %v1890
  %v1983 = vsub.f32 %v1832, %v1927
  %v1984 = vsub.f32 %v1836, %v1890
  %v1985 = vsub.f32 %v1838, %v1927
  %v1986 = vsub.f32 %v1840, %v1890
  %v1987 = vsub.f32 %v1842, %v1927
  %v1988 = vsub.f32 %v1846, %v1890
  %v1989 = vsub.f32 %v1848, %v1927
  %v1990 = vsub.f32 %v1850, %v1890
  %v1991 = vsub.f32 %v1852, %v1927
  %v1992 = vmul.f32 %v1928, 1.442695
  %v1993 = vpow.pop %v1992
  %v1994 = vmul.f32 %v1929, 1.442695
  %v1995 = vpow.pop %v1994
  %v1996 = vmul.f32 %v1930, 1.442695
  %v1997 = vpow.pop %v1996
  %v1998 = vmul.f32 %v1931, 1.442695
  %v1999 = vpow.pop %v1998
  %v2000 = vmul.f32 %v1932, 1.442695
  %v2001 = vpow.pop %v2000
  %v2002 = vmul.f32 %v1933, 1.442695
  %v2003 = vpow.pop %v2002
  %v2004 = vmul.f32 %v1934, 1.442695
  %v2005 = vpow.pop %v2004
  %v2006 = vmul.f32 %v1935, 1.442695
  %v2007 = vpow.pop %v2006
  %v2008 = vmul.f32 %v1936, 1.442695
  %v2009 = vpow.pop %v2008
  %v2010 = vmul.f32 %v1937, 1.442695
  %v2011 = vpow.pop %v2010
  %v2012 = vmul.f32 %v1938, 1.442695
  %v2013 = vpow.pop %v2012
  %v2014 = vmul.f32 %v1939, 1.442695
  %v2015 = vpow.pop %v2014
  %v2016 = vmul.f32 %v1940, 1.442695
  %v2017 = vpow.pop %v2016
  %v2018 = vmul.f32 %v1941, 1.442695
  %v2019 = vpow.pop %v2018
  %v2020 = vmul.f32 %v1942, 1.442695
  %v2021 = vpow.pop %v2020
  %v2022 = vmul.f32 %v1943, 1.442695
  %v2023 = vpow.pop %v2022
  %v2024 = vmul.f32 %v1944, 1.442695
  %v2025 = vpow.pop %v2024
  %v2026 = vmul.f32 %v1945, 1.442695
  %v2027 = vpow.pop %v2026
  %v2028 = vmul.f32 %v1946, 1.442695
  %v2029 = vpow.pop %v2028
  %v2030 = vmul.f32 %v1947, 1.442695
  %v2031 = vpow.pop %v2030
  %v2032 = vmul.f32 %v1948, 1.442695
  %v2033 = vpow.pop %v2032
  %v2034 = vmul.f32 %v1949, 1.442695
  %v2035 = vpow.pop %v2034
  %v2036 = vmul.f32 %v1950, 1.442695
  %v2037 = vpow.pop %v2036
  %v2038 = vmul.f32 %v1951, 1.442695
  %v2039 = vpow.pop %v2038
  %v2040 = vmul.f32 %v1952, 1.442695
  %v2041 = vpow.pop %v2040
  %v2042 = vmul.f32 %v1953, 1.442695
  %v2043 = vpow.pop %v2042
  %v2044 = vmul.f32 %v1954, 1.442695
  %v2045 = vpow.pop %v2044
  %v2046 = vmul.f32 %v1955, 1.442695
  %v2047 = vpow.pop %v2046
  %v2048 = vmul.f32 %v1956, 1.442695
  %v2049 = vpow.pop %v2048
  %v2050 = vmul.f32 %v1957, 1.442695
  %v2051 = vpow.pop %v2050
  %v2052 = vmul.f32 %v1958, 1.442695
  %v2053 = vpow.pop %v2052
  %v2054 = vmul.f32 %v1959, 1.442695
  %v2055 = vpow.pop %v2054
  %v2056 = vmul.f32 %v1960, 1.442695
  %v2057 = vpow.pop %v2056
  %v2058 = vmul.f32 %v1961, 1.442695
  %v2059 = vpow.pop %v2058
  %v2060 = vmul.f32 %v1962, 1.442695
  %v2061 = vpow.pop %v2060
  %v2062 = vmul.f32 %v1963, 1.442695
  %v2063 = vpow.pop %v2062
  %v2064 = vmul.f32 %v1964, 1.442695
  %v2065 = vpow.pop %v2064
  %v2066 = vmul.f32 %v1965, 1.442695
  %v2067 = vpow.pop %v2066
  %v2068 = vmul.f32 %v1966, 1.442695
  %v2069 = vpow.pop %v2068
  %v2070 = vmul.f32 %v1967, 1.442695
  %v2071 = vpow.pop %v2070
  %v2072 = vmul.f32 %v1968, 1.442695
  %v2073 = vpow.pop %v2072
  %v2074 = vmul.f32 %v1969, 1.442695
  %v2075 = vpow.pop %v2074
  %v2076 = vmul.f32 %v1970, 1.442695
  %v2077 = vpow.pop %v2076
  %v2078 = vmul.f32 %v1971, 1.442695
  %v2079 = vpow.pop %v2078
  %v2080 = vmul.f32 %v1972, 1.442695
  %v2081 = vpow.pop %v2080
  %v2082 = vmul.f32 %v1973, 1.442695
  %v2083 = vpow.pop %v2082
  %v2084 = vmul.f32 %v1974, 1.442695
  %v2085 = vpow.pop %v2084
  %v2086 = vmul.f32 %v1975, 1.442695
  %v2087 = vpow.pop %v2086
  %v2088 = vmul.f32 %v1976, 1.442695
  %v2089 = vpow.pop %v2088
  %v2090 = vmul.f32 %v1977, 1.442695
  %v2091 = vpow.pop %v2090
  %v2092 = vmul.f32 %v1978, 1.442695
  %v2093 = vpow.pop %v2092
  %v2094 = vmul.f32 %v1979, 1.442695
  %v2095 = vpow.pop %v2094
  %v2096 = vmul.f32 %v1980, 1.442695
  %v2097 = vpow.pop %v2096
  %v2098 = vmul.f32 %v1981, 1.442695
  %v2099 = vpow.pop %v2098
  %v2100 = vmul.f32 %v1982, 1.442695
  %v2101 = vpow.pop %v2100
  %v2102 = vmul.f32 %v1983, 1.442695
  %v2103 = vpow.pop %v2102
  %v2104 = vmul.f32 %v1984, 1.442695
  %v2105 = vpow.pop %v2104
  %v2106 = vmul.f32 %v1985, 1.442695
  %v2107 = vpow.pop %v2106
  %v2108 = vmul.f32 %v1986, 1.442695
  %v2109 = vpow.pop %v2108
  %v2110 = vmul.f32 %v1987, 1.442695
  %v2111 = vpow.pop %v2110
  %v2112 = vmul.f32 %v1988, 1.442695
  %v2113 = vpow.pop %v2112
  %v2114 = vmul.f32 %v1989, 1.442695
  %v2115 = vpow.pop %v2114
  %v2116 = vmul.f32 %v1990, 1.442695
  %v2117 = vpow.pop %v2116
  %v2118 = vmul.f32 %v1991, 1.442695
  %v2119 = vpow.pop %v2118
  %v2120 = vadd.f32 %v1993, %v1997
  %v2121 = vadd.f32 %v2120, %v2001
  %v2122 = vadd.f32 %v2121, %v2005
  %v2123 = vadd.f32 %v2122, %v2009
  %v2124 = vadd.f32 %v2123, %v2013
  %v2125 = vadd.f32 %v2124, %v2017
  %v2126 = vadd.f32 %v2125, %v2021
  %v2127 = vadd.f32 %v2126, %v2025
  %v2128 = vadd.f32 %v2127, %v2029
  %v2129 = vadd.f32 %v2128, %v2033
  %v2130 = vadd.f32 %v2129, %v2037
  %v2131 = vadd.f32 %v2130, %v2041
  %v2132 = vadd.f32 %v2131, %v2045
  %v2133 = vadd.f32 %v2132, %v2049
  %v2134 = vadd.f32 %v2133, %v2053
  %v2135 = vadd.f32 %v2134, %v2057
  %v2136 = vadd.f32 %v2135, %v2061
  %v2137 = vadd.f32 %v2136, %v2065
  %v2138 = vadd.f32 %v2137, %v2069
  %v2139 = vadd.f32 %v2138, %v2073
  %v2140 = vadd.f32 %v2139, %v2077
  %v2141 = vadd.f32 %v2140, %v2081
  %v2142 = vadd.f32 %v2141, %v2085
  %v2143 = vadd.f32 %v2142, %v2089
  %v2144 = vadd.f32 %v2143, %v2093
  %v2145 = vadd.f32 %v2144, %v2097
  %v2146 = vadd.f32 %v2145, %v2101
  %v2147 = vadd.f32 %v2146, %v2105
  %v2148 = vadd.f32 %v2147, %v2109
  %v2149 = vadd.f32 %v2148, %v2113
  %v2150 = vadd.f32 %v2149, %v2117
  %v2151 = vrot.slane %v2150, 4
  %v2152 = vadd.f32 %v2150, %v2151
  %v2153 = vrot.slane %v2152, 2
  %v2154 = vadd.f32 %v2152, %v2153
  %v2155 = vrot.slane %v2154, 1
  %v2156 = vadd.f32 %v2154, %v2155
  %v2157 = vadd.f32 %v1995, %v1999
  %v2158 = vadd.f32 %v2157, %v2003
  %v2159 = vadd.f32 %v2158, %v2007
  %v2160 = vadd.f32 %v2159, %v2011
  %v2161 = vadd.f32 %v2160, %v2015
  %v2162 = vadd.f32 %v2161, %v2019
  %v2163 = vadd.f32 %v2162, %v2023
  %v2164 = vadd.f32 %v2163, %v2027
  %v2165 = vadd.f32 %v2164, %v2031
  %v2166 = vadd.f32 %v2165, %v2035
  %v2167 = vadd.f32 %v2166, %v2039
  %v2168 = vadd.f32 %v2167, %v2043
  %v2169 = vadd.f32 %v2168, %v2047
  %v2170 = vadd.f32 %v2169, %v2051
  %v2171 = vadd.f32 %v2170, %v2055
  %v2172 = vadd.f32 %v2171, %v2059
  %v2173 = vadd.f32 %v2172, %v2063
  %v2174 = vadd.f32 %v2173, %v2067
  %v2175 = vadd.f32 %v2174, %v2071
  %v2176 = vadd.f32 %v2175, %v2075
  %v2177 = vadd.f32 %v2176, %v2079
  %v2178 = vadd.f32 %v2177, %v2083
  %v2179 = vadd.f32 %v2178, %v2087
  %v2180 = vadd.f32 %v2179, %v2091
  %v2181 = vadd.f32 %v2180, %v2095
  %v2182 = vadd.f32 %v2181, %v2099
  %v2183 = vadd.f32 %v2182, %v2103
  %v2184 = vadd.f32 %v2183, %v2107
  %v2185 = vadd.f32 %v2184, %v2111
  %v2186 = vadd.f32 %v2185, %v2115
  %v2187 = vadd.f32 %v2186, %v2119
  %v2188 = vrot.slane %v2187, 4
  %v2189 = vadd.f32 %v2187, %v2188
  %v2190 = vrot.slane %v2189, 2
  %v2191 = vadd.f32 %v2189, %v2190
  %v2192 = vrot.slane %v2191, 1
  %v2193 = vadd.f32 %v2191, %v2192
  %v2194 = vpack.c.bf16 %v1997, %v1993
  %v2195 = vpack.c.bf16 %v1999, %v1995
  %v2196 = vpack.c.bf16 %v2005, %v2001
  %v2197 = vpack.c.bf16 %v2007, %v2003
  %v2198 = vpack.c.bf16 %v2013, %v2009
  %v2199 = vpack.c.bf16 %v2015, %v2011
  %v2200 = vpack.c.bf16 %v2021, %v2017
  %v2201 = vpack.c.bf16 %v2023, %v2019
  %v2202 = vpack.c.bf16 %v2029, %v2025
  %v2203 = vpack.c.bf16 %v2031, %v2027
  %v2204 = vpack.c.bf16 %v2037, %v2033
  %v2205 = vpack.c.bf16 %v2039, %v2035
  %v2206 = vpack.c.bf16 %v2045, %v2041
  %v2207 = vpack.c.bf16 %v2047, %v2043
  %v2208 = vpack.c.bf16 %v2053, %v2049
  %v2209 = vpack.c.bf16 %v2055, %v2051
  %v2210 = vpack.c.bf16 %v2061, %v2057
  %v2211 = vpack.c.bf16 %v2063, %v2059
  %v2212 = vpack.c.bf16 %v2069, %v2065
  %v2213 = vpack.c.bf16 %v2071, %v2067
  %v2214 = vpack.c.bf16 %v2077, %v2073
  %v2215 = vpack.c.bf16 %v2079, %v2075
  %v2216 = vpack.c.bf16 %v2085, %v2081
  %v2217 = vpack.c.bf16 %v2087, %v2083
  %v2218 = vpack.c.bf16 %v2093, %v2089
  %v2219 = vpack.c.bf16 %v2095, %v2091
  %v2220 = vpack.c.bf16 %v2101, %v2097
  %v2221 = vpack.c.bf16 %v2103, %v2099
  %v2222 = vpack.c.bf16 %v2109, %v2105
  %v2223 = vpack.c.bf16 %v2111, %v2107
  %v2224 = vpack.c.bf16 %v2117, %v2113
  %v2225 = vpack.c.bf16 %v2119, %v2115
  %2226 = vmatprep.subr.bf16.mxu0 %v2195
  %2227 = vmatpush1.bf16.msra.mxu0 %v2194
  %2228 = vmatprep.subr.bf16.mxu0 %v2197
  %2229 = vmatpush1.bf16.msra.mxu0 %v2196
  %2230 = vmatprep.subr.bf16.mxu0 %v2199
  %2231 = vmatpush1.bf16.msra.mxu0 %v2198
  %2232 = vmatprep.subr.bf16.mxu0 %v2201
  %2233 = vmatpush1.bf16.msra.mxu0 %v2200
  %2234 = vmatprep.subr.bf16.mxu0 %v2203
  %2235 = vmatpush1.bf16.msra.mxu0 %v2202
  %2236 = vmatprep.subr.bf16.mxu0 %v2205
  %2237 = vmatpush1.bf16.msra.mxu0 %v2204
  %2238 = vmatprep.subr.bf16.mxu0 %v2207
  %2239 = vmatpush1.bf16.msra.mxu0 %v2206
  %2240 = vmatprep.subr.bf16.mxu0 %v2209
  %2241 = vmatpush1.bf16.msra.mxu0 %v2208
  %2242 = vmatprep.subr.bf16.mxu0 %v2211
  %2243 = vmatpush1.bf16.msra.mxu0 %v2210
  %2244 = vmatprep.subr.bf16.mxu0 %v2213
  %2245 = vmatpush1.bf16.msra.mxu0 %v2212
  %2246 = vmatprep.subr.bf16.mxu0 %v2215
  %2247 = vmatpush1.bf16.msra.mxu0 %v2214
  %2248 = vmatprep.subr.bf16.mxu0 %v2217
  %2249 = vmatpush1.bf16.msra.mxu0 %v2216
  %2250 = vmatprep.subr.bf16.mxu0 %v2219
  %2251 = vmatpush1.bf16.msra.mxu0 %v2218
  %2252 = vmatprep.subr.bf16.mxu0 %v2221
  %2253 = vmatpush1.bf16.msra.mxu0 %v2220
  %2254 = vmatprep.subr.bf16.mxu0 %v2223
  %2255 = vmatpush1.bf16.msra.mxu0 %v2222
  %2256 = vmatprep.subr.bf16.mxu0 %v2225
  %2257 = vmatpush1.bf16.msra.mxu0 %v2224
  %2258 = vmatprep.mubr.bf16.mxu0 %v1578
  %2259 = vmatmul.mubr.bf16.gmra.mrb[0].mxu0 %v1577
  %v2260 = vpop.f32.mrb[0].mxu0
  %v2261 = vadd.f32 0.0, %v2260
  %v2262 = vpop.f32.mrb[0].mxu0
  %v2263 = vadd.f32 0.0, %v2262
  %v2264 = vpop.f32.mrb[0].mxu0
  %v2265 = vadd.f32 0.0, %v2264
  %v2266 = vpop.f32.mrb[0].mxu0
  %v2267 = vadd.f32 0.0, %v2266
  %2268 = vmatprep.mubr.bf16.mxu0 %v1580
  %2269 = vmatmul.mubr.bf16.gmra.mrb[0].mxu0 %v1579
  %v2270 = vpop.f32.mrb[0].mxu0
  %v2271 = vadd.f32 0.0, %v2270
  %v2272 = vpop.f32.mrb[0].mxu0
  %v2273 = vadd.f32 0.0, %v2272
  %v2274 = vpop.f32.mrb[0].mxu0
  %v2275 = vadd.f32 0.0, %v2274
  %v2276 = vpop.f32.mrb[0].mxu0
  %v2277 = vadd.f32 0.0, %v2276
  %2278 = vdwg.mxu0
  %v2279 = vrcp.pop %v2156
  %v2280 = vrcp.pop %v2193
  %v2281 = vmul.f32 %v2261, %v2279
  %v2282 = vmul.f32 %v2263, %v2280
  %v2283 = vmul.f32 %v2265, %v2279
  %v2284 = vmul.f32 %v2267, %v2280
  %v2285 = vmul.f32 %v2271, %v2279
  %v2286 = vmul.f32 %v2273, %v2280
  %v2287 = vmul.f32 %v2275, %v2279
  %v2288 = vmul.f32 %v2277, %v2280
  %v2289 = vmax.f32 %v2281, 0.0
  %v2290 = vmax.f32 %v2282, 0.0
  %v2291 = vmax.f32 %v2283, 0.0
  %v2292 = vmax.f32 %v2284, 0.0
  %v2293 = vmax.f32 %v2285, 0.0
  %v2294 = vmax.f32 %v2286, 0.0
  %v2295 = vmax.f32 %v2287, 0.0
  %v2296 = vmax.f32 %v2288, 0.0
  %v2297 = vpack.c.bf16 %v2291, %v2289
  %v2298 = vpack.c.bf16 %v2292, %v2290
  %v2299 = vpack.c.bf16 %v2295, %v2293
  %v2300 = vpack.c.bf16 %v2296, %v2294
  %v2301 = vmax.f32 %v1402, 0.0
  %v2302 = vmax.f32 %v1403, 0.0
  %v2303 = vmax.f32 %v1404, 0.0
  %v2304 = vmax.f32 %v1405, 0.0
  %v2305 = vmax.f32 %v1406, 0.0
  %v2306 = vmax.f32 %v1407, 0.0
  %v2307 = vmax.f32 %v1408, 0.0
  %v2308 = vmax.f32 %v1409, 0.0
  %v2309 = vpack.c.bf16 %v2303, %v2301
  %v2310 = vpack.c.bf16 %v2304, %v2302
  %v2311 = vpack.c.bf16 %v2307, %v2305
  %v2312 = vpack.c.bf16 %v2308, %v2306
  %2313 = vmatprep.subr.bf16.mxu0 %v2310
  %2314 = vmatpush1.bf16.msra.mxu0 %v2309
  %2315 = vmatprep.subr.bf16.mxu0 %v2312
  %2316 = vmatpush1.bf16.msra.mxu0 %v2311
  %2317 = vmatprep.subr.bf16.mxu0 0
  %2318 = vmatpush1.bf16.msra.mxu0 0
  %2319 = vmatprep.subr.bf16.mxu0 0
  %2320 = vmatpush1.bf16.msra.mxu0 0
  %2321 = vmatprep.subr.bf16.mxu0 0
  %2322 = vmatpush1.bf16.msra.mxu0 0
  %2323 = vmatprep.subr.bf16.mxu0 0
  %2324 = vmatpush1.bf16.msra.mxu0 0
  %2325 = vmatprep.subr.bf16.mxu0 0
  %2326 = vmatpush1.bf16.msra.mxu0 0
  %2327 = vmatprep.subr.bf16.mxu0 0
  %2328 = vmatpush1.bf16.msra.mxu0 0
  %2329 = vmatprep.subr.bf16.mxu0 0
  %2330 = vmatpush1.bf16.msra.mxu0 0
  %2331 = vmatprep.subr.bf16.mxu0 0
  %2332 = vmatpush1.bf16.msra.mxu0 0
  %2333 = vmatprep.subr.bf16.mxu0 0
  %2334 = vmatpush1.bf16.msra.mxu0 0
  %2335 = vmatprep.subr.bf16.mxu0 0
  %2336 = vmatpush1.bf16.msra.mxu0 0
  %2337 = vmatprep.subr.bf16.mxu0 0
  %2338 = vmatpush1.bf16.msra.mxu0 0
  %2339 = vmatprep.subr.bf16.mxu0 0
  %2340 = vmatpush1.bf16.msra.mxu0 0
  %2341 = vmatprep.subr.bf16.mxu0 0
  %2342 = vmatpush1.bf16.msra.mxu0 0
  %2343 = vmatprep.subr.bf16.mxu0 0
  %2344 = vmatpush1.bf16.msra.mxu0 0
  %2345 = vmatprep.mubr.bf16.mxu0 0
  %2346 = vmatmul.mubr.bf16.gmra.mrb[0].mxu0 %v1132
  %v2347 = vpop.f32.mrb[0].mxu0
  %v2348 = vadd.f32 0.0, %v2347
  %v2349 = vpop.f32.mrb[0].mxu0
  %v2350 = vadd.f32 0.0, %v2349
  %v2351 = vpop.f32.mrb[0].mxu0
  %v2352 = vadd.f32 0.0, %v2351
  %v2353 = vpop.f32.mrb[0].mxu0
  %v2354 = vadd.f32 0.0, %v2353
  %2355 = vmatprep.mubr.bf16.mxu0 0
  %2356 = vmatmul.mubr.bf16.gmra.mrb[0].mxu0 %v1135
  %v2357 = vpop.f32.mrb[0].mxu0
  %v2358 = vadd.f32 0.0, %v2357
  %v2359 = vpop.f32.mrb[0].mxu0
  %v2360 = vadd.f32 0.0, %v2359
  %v2361 = vpop.f32.mrb[0].mxu0
  %v2362 = vadd.f32 0.0, %v2361
  %v2363 = vpop.f32.mrb[0].mxu0
  %v2364 = vadd.f32 0.0, %v2363
  %2365 = vmatprep.mubr.bf16.mxu0 0
  %2366 = vmatmul.mubr.bf16.gmra.mrb[0].mxu0 %v1138
  %v2367 = vpop.f32.mrb[0].mxu0
  %v2368 = vadd.f32 0.0, %v2367
  %v2369 = vpop.f32.mrb[0].mxu0
  %v2370 = vadd.f32 0.0, %v2369
  %v2371 = vpop.f32.mrb[0].mxu0
  %v2372 = vadd.f32 0.0, %v2371
  %v2373 = vpop.f32.mrb[0].mxu0
  %v2374 = vadd.f32 0.0, %v2373
  %2375 = vmatprep.mubr.bf16.mxu0 0
  %2376 = vmatmul.mubr.bf16.gmra.mrb[0].mxu0 %v1141
  %v2377 = vpop.f32.mrb[0].mxu0
  %v2378 = vadd.f32 0.0, %v2377
  %v2379 = vpop.f32.mrb[0].mxu0
  %v2380 = vadd.f32 0.0, %v2379
  %v2381 = vpop.f32.mrb[0].mxu0
  %v2382 = vadd.f32 0.0, %v2381
  %v2383 = vpop.f32.mrb[0].mxu0
  %v2384 = vadd.f32 0.0, %v2383
  %2385 = vdwg.mxu0
  %2386 = vmatprep.subr.bf16.mxu0 %v2298
  %2387 = vmatpush1.bf16.msra.mxu0 %v2297
  %2388 = vmatprep.subr.bf16.mxu0 %v2300
  %2389 = vmatpush1.bf16.msra.mxu0 %v2299
  %2390 = vmatprep.subr.bf16.mxu0 0
  %2391 = vmatpush1.bf16.msra.mxu0 0
  %2392 = vmatprep.subr.bf16.mxu0 0
  %2393 = vmatpush1.bf16.msra.mxu0 0
  %2394 = vmatprep.subr.bf16.mxu0 0
  %2395 = vmatpush1.bf16.msra.mxu0 0
  %2396 = vmatprep.subr.bf16.mxu0 0
  %2397 = vmatpush1.bf16.msra.mxu0 0
  %2398 = vmatprep.subr.bf16.mxu0 0
  %2399 = vmatpush1.bf16.msra.mxu0 0
  %2400 = vmatprep.subr.bf16.mxu0 0
  %2401 = vmatpush1.bf16.msra.mxu0 0
  %2402 = vmatprep.subr.bf16.mxu0 0
  %2403 = vmatpush1.bf16.msra.mxu0 0
  %2404 = vmatprep.subr.bf16.mxu0 0
  %2405 = vmatpush1.bf16.msra.mxu0 0
  %2406 = vmatprep.subr.bf16.mxu0 0
  %2407 = vmatpush1.bf16.msra.mxu0 0
  %2408 = vmatprep.subr.bf16.mxu0 0
  %2409 = vmatpush1.bf16.msra.mxu0 0
  %2410 = vmatprep.subr.bf16.mxu0 0
  %2411 = vmatpush1.bf16.msra.mxu0 0
  %2412 = vmatprep.subr.bf16.mxu0 0
  %2413 = vmatpush1.bf16.msra.mxu0 0
  %2414 = vmatprep.subr.bf16.mxu0 0
  %2415 = vmatpush1.bf16.msra.mxu0 0
  %2416 = vmatprep.subr.bf16.mxu0 0
  %2417 = vmatpush1.bf16.msra.mxu0 0
  %2418 = vmatprep.mubr.bf16.mxu0 0
  %2419 = vmatmul.mubr.bf16.gmra.mrb[0].mxu0 %v1237
  %v2420 = vpop.f32.mrb[0].mxu0
  %v2421 = vadd.f32 %v2348, %v2420
  %v2422 = vpop.f32.mrb[0].mxu0
  %v2423 = vadd.f32 %v2350, %v2422
  %v2424 = vpop.f32.mrb[0].mxu0
  %v2425 = vadd.f32 %v2352, %v2424
  %v2426 = vpop.f32.mrb[0].mxu0
  %v2427 = vadd.f32 %v2354, %v2426
  %2428 = vmatprep.mubr.bf16.mxu0 0
  %2429 = vmatmul.mubr.bf16.gmra.mrb[0].mxu0 %v1240
  %v2430 = vpop.f32.mrb[0].mxu0
  %v2431 = vadd.f32 %v2358, %v2430
  %v2432 = vpop.f32.mrb[0].mxu0
  %v2433 = vadd.f32 %v2360, %v2432
  %v2434 = vpop.f32.mrb[0].mxu0
  %v2435 = vadd.f32 %v2362, %v2434
  %v2436 = vpop.f32.mrb[0].mxu0
  %v2437 = vadd.f32 %v2364, %v2436
  %2438 = vmatprep.mubr.bf16.mxu0 0
  %2439 = vmatmul.mubr.bf16.gmra.mrb[0].mxu0 %v1243
  %v2440 = vpop.f32.mrb[0].mxu0
  %v2441 = vadd.f32 %v2368, %v2440
  %v2442 = vpop.f32.mrb[0].mxu0
  %v2443 = vadd.f32 %v2370, %v2442
  %v2444 = vpop.f32.mrb[0].mxu0
  %v2445 = vadd.f32 %v2372, %v2444
  %v2446 = vpop.f32.mrb[0].mxu0
  %v2447 = vadd.f32 %v2374, %v2446
  %2448 = vmatprep.mubr.bf16.mxu0 0
  %2449 = vmatmul.mubr.bf16.gmra.mrb[0].mxu0 %v1246
  %v2450 = vpop.f32.mrb[0].mxu0
  %v2451 = vadd.f32 %v2378, %v2450
  %v2452 = vpop.f32.mrb[0].mxu0
  %v2453 = vadd.f32 %v2380, %v2452
  %v2454 = vpop.f32.mrb[0].mxu0
  %v2455 = vadd.f32 %v2382, %v2454
  %v2456 = vpop.f32.mrb[0].mxu0
  %v2457 = vadd.f32 %v2384, %v2456
  %2458 = vdwg.mxu0
  %v2459 = vadd.f32 %v2421, %v1324
  %v2460 = vadd.f32 %v2423, %v1324
  %v2461 = vadd.f32 %v2425, %v1329
  %v2462 = vadd.f32 %v2427, %v1329
  %v2463 = vadd.f32 %v2431, %v1334
  %v2464 = vadd.f32 %v2433, %v1334
  %v2465 = vadd.f32 %v2435, %v1339
  %v2466 = vadd.f32 %v2437, %v1339
  %v2467 = vadd.f32 %v2441, %v1344
  %v2468 = vadd.f32 %v2443, %v1344
  %v2469 = vadd.f32 %v2445, %v1349
  %v2470 = vadd.f32 %v2447, %v1349
  %v2471 = vadd.f32 %v2451, %v1354
  %v2472 = vadd.f32 %v2453, %v1354
  %v2473 = vadd.f32 %v2455, %v1359
  %v2474 = vadd.f32 %v2457, %v1359
  %s2475 = scalar_lea.vmem %s8, 128
  %2476 = vst [vmem:[%s2475] sm:$0xff] %v2459
  %2477 = vst [vmem:[%s2475 + $0x8] sm:$0xff] %v2460
  %2478 = vst [vmem:[%s2475 + $0x10] sm:$0xff] %v2461
  %2479 = vst [vmem:[%s2475 + $0x18] sm:$0xff] %v2462
  %2480 = vst [vmem:[%s2475 + $0x20] sm:$0xff] %v2463
  %2481 = vst [vmem:[%s2475 + $0x28] sm:$0xff] %v2464
  %2482 = vst [vmem:[%s2475 + $0x30] sm:$0xff] %v2465
  %2483 = vst [vmem:[%s2475 + $0x38] sm:$0xff] %v2466
  %2484 = vst [vmem:[%s2475 + $0x40] sm:$0xff] %v2467
  %2485 = vst [vmem:[%s2475 + $0x48] sm:$0xff] %v2468
  %2486 = vst [vmem:[%s2475 + $0x50] sm:$0xff] %v2469
  %2487 = vst [vmem:[%s2475 + $0x58] sm:$0xff] %v2470
  %2488 = vst [vmem:[%s2475 + $0x60] sm:$0xff] %v2471
  %2489 = vst [vmem:[%s2475 + $0x68] sm:$0xff] %v2472
  %2490 = vst [vmem:[%s2475 + $0x70] sm:$0xff] %v2473
  %2491 = vst [vmem:[%s2475 + $0x78] sm:$0xff] %v2474
  // Predicated region
  $region34: #{shsa_forward.1} parent=0 // pred_check
    _
  $region35: #{shsa_forward.1} parent=0 // pred_check_branch
    %2493 = sbr.rel (0) target = $region37
  $region36: #{shsa_forward.1} parent=0 // pred_region
    _
  $region37: #{shsa_forward.1} parent=0 // pred_fallthru
    _
  // Predicated region
  $region38: #{shsa_forward.1} parent=0 // pred_check
    _
  $region39: #{shsa_forward.1} parent=0 // pred_check_branch
    %2495 = sbr.rel (0) target = $region41
  $region40: #{shsa_forward.1} parent=0 // pred_region
    _
  $region41: #{shsa_forward.1} parent=0 // pred_fallthru
    _

</llo_original>
